<compile_context>
chip_gen: v6e
topology: v6e:2x2x1
jax: 0.10.0
libtpu: 0.0.40
codegen_flags: <defaults>
</compile_context>

<pallas_src>
import functools

import jax
import jax.numpy as jnp
from jax.experimental import pallas as pl
from jax.experimental.pallas import tpu as pltpu


def _round_up(x, m):
    return (x + m - 1) // m * m


def _dropout_keep_mask(row_offset, shape, feat_dim, seed_scalar):
    """P(keep)=0.5 mask from a stateless integer hash.

    Identical results inside the kernel and in the pure-JAX reference: the hash
    only depends on (seed, global row index, column index).
    """
    r = jax.lax.broadcasted_iota(jnp.int32, shape, 0) + row_offset
    c = jax.lax.broadcasted_iota(jnp.int32, shape, 1)
    v = (r * feat_dim + c).astype(jnp.uint32)
    v = v + seed_scalar.astype(jnp.uint32) * jnp.uint32(2654435761)
    # murmur3-style finalizer: well-mixed bits, wraps mod 2**32.
    v = v ^ (v >> 16)
    v = v * jnp.uint32(0x7FEB352D)
    v = v ^ (v >> 15)
    v = v * jnp.uint32(0x846CA68B)
    v = v ^ (v >> 16)
    return (v >> 31) != jnp.uint32(0)      # top bit -> keep with p = 0.5


# --------------------------------------------------------------------------
# Kernel A: h = dropout(relu(x @ W1 + b1))   (row-tiled, bf16 output)
# --------------------------------------------------------------------------
def _hidden_kernel(seed_ref, x_ref, w1_ref, b1_ref, h_ref):
    tm, h_f = h_ref.shape
    h = jnp.dot(x_ref[...], w1_ref[...], preferred_element_type=jnp.float32)
    h = jnp.maximum(h + b1_ref[...], 0.0)

    # Dropout(p=0.5), training mode; kept units scaled by 1/(1-p) = 2.
    keep = _dropout_keep_mask(pl.program_id(0) * tm, (tm, h_f), h_f,
                              seed_ref[0])
    h = jnp.where(keep, h + h, 0.0)
    h_ref[...] = h.astype(h_ref.dtype)


# --------------------------------------------------------------------------
# Kernel B: out = softmax(relu((adj @ h) @ W2 + b2), axis=-1)
# grid = (row tiles i, reduction tiles k); f32 accumulator scratch.
# --------------------------------------------------------------------------
def _propagate_kernel(adj_ref, h_ref, w2_ref, b2_ref, out_ref, acc_ref):
    k = pl.program_id(1)

    @pl.when(k == 0)
    def _init():
        acc_ref[...] = jnp.zeros_like(acc_ref)

    acc_ref[...] += jnp.dot(adj_ref[...], h_ref[...],
                            preferred_element_type=jnp.float32)

    @pl.when(k == pl.num_programs(1) - 1)
    def _finalize():
        z = acc_ref[...]                                   # f32
        y = jnp.dot(z, w2_ref[...],
                    preferred_element_type=jnp.float32) + b2_ref[...]
        y = jnp.maximum(y, 0.0)
        m = jnp.max(y, axis=-1, keepdims=True)
        e = jnp.exp(y - m)
        out_ref[...] = e / jnp.sum(e, axis=-1, keepdims=True)


@functools.partial(jax.jit, static_argnames=("tm", "tk"))
def _fedgcn_forward_jit(x, adj, w1, b1, w2, b2, seed, *, tm, tk):
    n, in_f = x.shape
    h_f = w1.shape[1]
    out_f = w2.shape[1]

    npad = _round_up(n, max(tm, tk))
    if npad != n:
        # Zero padding: padded adj rows/cols are 0, so padded h rows contribute
        # nothing to the first n output rows (which is all we return).
        x = jnp.pad(x, ((0, npad - n), (0, 0)))
        adj = jnp.pad(adj, ((0, npad - n), (0, npad - n)))

    # bf16 matmul operands (f32 accumulation in-kernel): halves the dominant
    # HBM stream (adj is n*n bytes) and doubles MXU peak on all generations.
    xb = x.astype(jnp.bfloat16)
    adjb = adj.astype(jnp.bfloat16)
    w1b = w1.astype(jnp.bfloat16)
    w2f = w2.astype(jnp.float32)          # tiny + resident; keep 2nd GEMM f32
    b1f = b1.reshape(1, h_f).astype(jnp.float32)
    b2f = b2.reshape(1, out_f).astype(jnp.float32)
    seed = seed.reshape((1,)).astype(jnp.int32)

    # ---- Kernel A: hidden activations ------------------------------------
    h = pl.pallas_call(
        _hidden_kernel,
        out_shape=jax.ShapeDtypeStruct((npad, h_f), jnp.bfloat16),
        grid_spec=pltpu.PrefetchScalarGridSpec(
            num_scalar_prefetch=1,
            grid=(npad // tm,),
            in_specs=[
                pl.BlockSpec((tm, in_f), lambda i, s: (i, 0)),
                pl.BlockSpec((in_f, h_f), lambda i, s: (0, 0)),
                pl.BlockSpec((1, h_f), lambda i, s: (0, 0)),
            ],
            out_specs=pl.BlockSpec((tm, h_f), lambda i, s: (i, 0)),
        ),
        compiler_params=pltpu.CompilerParams(
            dimension_semantics=("parallel",)),
    )(seed, xb, w1b, b1f)

    # ---- Kernel B: propagate + classify -----------------------------------
    flops = 2 * npad * npad * h_f + 2 * npad * h_f * out_f
    bytes_accessed = (2 * npad * npad          # adj (bf16)
                      + 2 * npad * h_f         # h (bf16)
                      + 4 * npad * out_f)      # out (f32)
    out = pl.pallas_call(
        _propagate_kernel,
        out_shape=jax.ShapeDtypeStruct((npad, out_f), jnp.float32),
        grid_spec=pltpu.PrefetchScalarGridSpec(
            num_scalar_prefetch=0,
            grid=(npad // tm, npad // tk),
            in_specs=[
                pl.BlockSpec((tm, tk), lambda i, k: (i, k)),
                pl.BlockSpec((tk, h_f), lambda i, k: (k, 0)),
                pl.BlockSpec((h_f, out_f), lambda i, k: (0, 0)),
                pl.BlockSpec((1, out_f), lambda i, k: (0, 0)),
            ],
            out_specs=pl.BlockSpec((tm, out_f), lambda i, k: (i, 0)),
            scratch_shapes=[pltpu.VMEM((tm, h_f), jnp.float32)],
        ),
        compiler_params=pltpu.CompilerParams(
            dimension_semantics=("parallel", "arbitrary")),
        cost_estimate=pl.CostEstimate(
            flops=flops,
            transcendentals=npad * out_f,
            bytes_accessed=bytes_accessed),
    )(adjb, h, w2f, b2f)

    return out[:n]


def fedgcn_forward(x, adj, w1, b1, w2, b2, seed):
    """w1: [in, hidden], w2: [hidden, out] (PyTorch weights pre-transposed)."""
    n = x.shape[0]
    # Generation-friendly tiles: row tile (parallel across TCs on v7x) and adj
    # contraction tile.  Both multiples of 128; tk is a multiple of tm so a
    # single pad-to-tk keeps every block shape divisible.  These stay far under
    # v7x's 32 MiB default-scoped VMEM even with double buffering.
    tm = 256 if n >= 256 else 128
    tk = 512 if n >= 512 else (256 if n >= 256 else 128)
    return _fedgcn_forward_jit(x, adj, w1, b1, w2, b2, seed, tm=tm, tk=tk)


# --------------------------------------------------------------------------
# Pure-JAX reference (mirrors the kernel's bf16 operand / f32 accum choices
# and the exact same hash-based dropout mask).
# --------------------------------------------------------------------------
def fedgcn_reference(x, adj, w1, b1, w2, b2, seed):
    h = jnp.dot(x.astype(jnp.bfloat16), w1.astype(jnp.bfloat16),
                preferred_element_type=jnp.float32) + b1.reshape(1, -1)
    h = jnp.maximum(h, 0.0)
    keep = _dropout_keep_mask(0, h.shape, h.shape[1],
                              seed.reshape(-1)[0].astype(jnp.int32))
    h = jnp.where(keep, h + h, 0.0).astype(jnp.bfloat16)
    z = jnp.dot(adj.astype(jnp.bfloat16), h, preferred_element_type=jnp.float32)
    y = jnp.dot(z, w2.astype(jnp.float32),
                preferred_element_type=jnp.float32) + b2.reshape(1, -1)
    y = jnp.maximum(y, 0.0)
    return jax.nn.softmax(y, axis=1)


def kaiming_normal(key, out_f, in_f):
    # nn.init.kaiming_normal_ on [out_f, in_f]: fan_in = in_f, gain = sqrt(2)
    std = (2.0 / in_f) ** 0.5
    return jax.random.normal(key, (out_f, in_f), jnp.float32) * std


def linear_bias(key, in_f, out_f):
    # nn.Linear default bias init: U(-1/sqrt(fan_in), 1/sqrt(fan_in))
    bound = 1.0 / (in_f ** 0.5)
    return jax.random.uniform(key, (out_f,), jnp.float32, -bound, bound)


if __name__ == "__main__":
    # Small, module-consistent shapes.
    N, IN_FEATS, H_FEATS, OUT_FEATS = 64, 16, 32, 8

    key = jax.random.PRNGKey(0)
    k_x, k_adj, k_w1, k_b1, k_w2, k_b2 = jax.random.split(key, 6)

    x = jax.random.normal(k_x, (N, IN_FEATS), jnp.float32)

    # Symmetric row-normalized adjacency-ish matrix (dense), deterministic.
    a = (jax.random.uniform(k_adj, (N, N)) > 0.7).astype(jnp.float32)
    a = jnp.maximum(a, a.T) + jnp.eye(N, dtype=jnp.float32)
    adj = a / jnp.sum(a, axis=1, keepdims=True)

    # Parameters (PyTorch nn.Linear stores weight as [out, in]; transpose to
    # [in, out] for the kernel's row-major matmuls).
    w1 = kaiming_normal(k_w1, H_FEATS, IN_FEATS).T
    w2 = kaiming_normal(k_w2, OUT_FEATS, H_FEATS).T
    b1 = linear_bias(k_b1, IN_FEATS, H_FEATS)
    b2 = linear_bias(k_b2, H_FEATS, OUT_FEATS)

    seed = jnp.array([1234], dtype=jnp.int32)

    out = fedgcn_forward(x, adj, w1, b1, w2, b2, seed)
    jax.block_until_ready(out)

    # Sanity checks.
    assert out.shape == (N, OUT_FEATS)
    assert bool(jnp.all(jnp.isfinite(out)))
    assert bool(jnp.allclose(jnp.sum(out, axis=1), 1.0, atol=1e-4))

    ref = fedgcn_reference(x, adj, w1, b1, w2, b2, seed)
    assert bool(jnp.allclose(out, ref, atol=5e-3, rtol=1e-2))

    print("KERNEL_OK")
</pallas_src>

<mosaic_0001>
module attributes {stable_mosaic.version = 11 : i64} {
  func.func @_propagate_kernel(%arg0: i32, %arg1: i32, %arg2: memref<128x128xbf16, #tpu.memory_space<vmem>>, %arg3: memref<128x32xbf16, #tpu.memory_space<vmem>>, %arg4: memref<32x8xf32, #tpu.memory_space<vmem>>, %arg5: memref<1x8xf32, #tpu.memory_space<vmem>>, %arg6: memref<128x8xf32, #tpu.memory_space<vmem>>, %arg7: memref<128x32xf32, #tpu.memory_space<vmem>>) attributes {dimension_semantics = [#tpu.dimension_semantics<parallel>, #tpu.dimension_semantics<arbitrary>], iteration_bounds = array<i64: 1, 1>, scalar_prefetch = 0 : i64, scratch_operands = 1 : i64, tpu.core_type = #tpu.core_type<tc>, window_params = [{transform_indices = @transform_0, window_bounds = array<i64: 128, 128>}, {transform_indices = @transform_1, window_bounds = array<i64: 128, 32>}, {pipeline_mode = #tpu.pipeline_mode<synchronous>, transform_indices = @transform_2, window_bounds = array<i64: 32, 8>}, {pipeline_mode = #tpu.pipeline_mode<synchronous>, transform_indices = @transform_3, window_bounds = array<i64: 1, 8>}, {transform_indices = @transform_4, window_bounds = array<i64: 128, 8>}]} {
    %c0_i32 = arith.constant 0 : i32
    %0 = arith.cmpi eq, %arg1, %c0_i32 : i32
    %1 = arith.extui %0 : i1 to i32
    %c0_i32_0 = arith.constant 0 : i32
    %2 = arith.cmpi ne, %1, %c0_i32_0 : i32
    scf.if %2 {
      %cst_10 = arith.constant 0.000000e+00 : f32
      %12 = vector.broadcast %cst_10 : f32 to vector<128x32xf32>
      %c0_11 = arith.constant 0 : index
      %c0_12 = arith.constant 0 : index
      %13 = vector.load %arg7[%c0_11, %c0_12] : memref<128x32xf32, #tpu.memory_space<vmem>>, vector<128x32xf32>
      tpu.vector_store %arg7[%c0_11, %c0_12], %12 {strides = array<i32>} : memref<128x32xf32, #tpu.memory_space<vmem>>, vector<128x32xf32>,
    } else {
    }
    %c0 = arith.constant 0 : index
    %c0_1 = arith.constant 0 : index
    %3 = vector.load %arg7[%c0, %c0_1] : memref<128x32xf32, #tpu.memory_space<vmem>>, vector<128x32xf32>
    %c0_2 = arith.constant 0 : index
    %c0_3 = arith.constant 0 : index
    %4 = vector.load %arg2[%c0_2, %c0_3] : memref<128x128xbf16, #tpu.memory_space<vmem>>, vector<128x128xbf16>
    %c0_4 = arith.constant 0 : index
    %c0_5 = arith.constant 0 : index
    %5 = vector.load %arg3[%c0_4, %c0_5] : memref<128x32xbf16, #tpu.memory_space<vmem>>, vector<128x32xbf16>
    %cst = arith.constant dense<0.000000e+00> : vector<128x32xf32>
    %6 = tpu.matmul %4, %5, %cst {dimension_numbers = #tpu.dot_dimension_numbers<[1], [0], [0], [1], [0, 0, 1, 1], [], []>} : vector<128x128xbf16>, vector<128x32xbf16>, vector<128x32xf32> -> vector<128x32xf32>
    %7 = arith.addf %3, %6 : vector<128x32xf32>
    %c0_6 = arith.constant 0 : index
    %c0_7 = arith.constant 0 : index
    %8 = vector.load %arg7[%c0_6, %c0_7] : memref<128x32xf32, #tpu.memory_space<vmem>>, vector<128x32xf32>
    tpu.vector_store %arg7[%c0_6, %c0_7], %7 {strides = array<i32>} : memref<128x32xf32, #tpu.memory_space<vmem>>, vector<128x32xf32>,
    %c0_i32_8 = arith.constant 0 : i32
    %9 = arith.cmpi eq, %arg1, %c0_i32_8 : i32
    %10 = arith.extui %9 : i1 to i32
    %c0_i32_9 = arith.constant 0 : i32
    %11 = arith.cmpi ne, %10, %c0_i32_9 : i32
    scf.if %11 {
      %c0_10 = arith.constant 0 : index
      %c0_11 = arith.constant 0 : index
      %12 = vector.load %arg7[%c0_10, %c0_11] : memref<128x32xf32, #tpu.memory_space<vmem>>, vector<128x32xf32>
      %c0_12 = arith.constant 0 : index
      %c0_13 = arith.constant 0 : index
      %13 = vector.load %arg4[%c0_12, %c0_13] : memref<32x8xf32, #tpu.memory_space<vmem>>, vector<32x8xf32>
      %cst_14 = arith.constant dense<0.000000e+00> : vector<128x8xf32>
      %14 = tpu.matmul %12, %13, %cst_14 {dimension_numbers = #tpu.dot_dimension_numbers<[1], [0], [0], [1], [0, 0, 1, 1], [], []>} : vector<128x32xf32>, vector<32x8xf32>, vector<128x8xf32> -> vector<128x8xf32>
      %c0_15 = arith.constant 0 : index
      %c0_16 = arith.constant 0 : index
      %15 = vector.load %arg5[%c0_15, %c0_16] : memref<1x8xf32, #tpu.memory_space<vmem>>, vector<1x8xf32>
      %16 = vector.broadcast %15 : vector<1x8xf32> to vector<128x8xf32>
      %17 = arith.addf %14, %16 : vector<128x8xf32>
      %cst_17 = arith.constant 0.000000e+00 : f32
      %18 = vector.broadcast %cst_17 : f32 to vector<128x8xf32>
      %19 = arith.maximumf %17, %18 : vector<128x8xf32>
      %cst_18 = arith.constant dense<0xFF800000> : vector<128xf32>
      %20 = vector.multi_reduction <maximumf>, %19, %cst_18 [1] : vector<128x8xf32> to vector<128xf32>
      %21 = vector.shape_cast %20 : vector<128xf32> to vector<128x1xf32>
      %22 = vector.broadcast %21 : vector<128x1xf32> to vector<128x8xf32>
      %23 = arith.subf %19, %22 : vector<128x8xf32>
      %24 = math.exp %23 : vector<128x8xf32>
      %cst_19 = arith.constant dense<0.000000e+00> : vector<128xf32>
      %25 = vector.multi_reduction <add>, %24, %cst_19 [1] : vector<128x8xf32> to vector<128xf32>
      %26 = vector.shape_cast %25 : vector<128xf32> to vector<128x1xf32>
      %27 = vector.broadcast %26 : vector<128x1xf32> to vector<128x8xf32>
      %28 = arith.divf %24, %27 : vector<128x8xf32>
      %c0_20 = arith.constant 0 : index
      %c0_21 = arith.constant 0 : index
      %29 = vector.load %arg6[%c0_20, %c0_21] : memref<128x8xf32, #tpu.memory_space<vmem>>, vector<128x8xf32>
      tpu.vector_store %arg6[%c0_20, %c0_21], %28 {strides = array<i32>} : memref<128x8xf32, #tpu.memory_space<vmem>>, vector<128x8xf32>,
    } else {
    }
    return
  }
  func.func @transform_0(%arg0: i32, %arg1: i32) -> (i32, i32) {
    %c0_i32 = arith.constant 0 : i32
    return %arg0, %arg1 : i32, i32
  }
  func.func @transform_1(%arg0: i32, %arg1: i32) -> (i32, i32) {
    %c0_i32 = arith.constant 0 : i32
    %c0_i32_0 = arith.constant 0 : i32
    return %arg1, %c0_i32 : i32, i32
  }
  func.func @transform_2(%arg0: i32, %arg1: i32) -> (i32, i32) {
    %c0_i32 = arith.constant 0 : i32
    %c0_i32_0 = arith.constant 0 : i32
    %c0_i32_1 = arith.constant 0 : i32
    return %c0_i32, %c0_i32_0 : i32, i32
  }
  func.func @transform_3(%arg0: i32, %arg1: i32) -> (i32, i32) {
    %c0_i32 = arith.constant 0 : i32
    %c0_i32_0 = arith.constant 0 : i32
    %c0_i32_1 = arith.constant 0 : i32
    return %c0_i32, %c0_i32_0 : i32, i32
  }
  func.func @transform_4(%arg0: i32, %arg1: i32) -> (i32, i32) {
    %c0_i32 = arith.constant 0 : i32
    %c0_i32_0 = arith.constant 0 : i32
    return %arg0, %c0_i32 : i32, i32
  }
}

module attributes {stable_mosaic.version = 11 : i64} {
  func.func @_hidden_kernel(%arg0: i32, %arg1: memref<1xi32, #tpu.memory_space<smem>>, %arg2: memref<128x16xbf16, #tpu.memory_space<vmem>>, %arg3: memref<16x32xbf16, #tpu.memory_space<vmem>>, %arg4: memref<1x32xf32, #tpu.memory_space<vmem>>, %arg5: memref<128x32xbf16, #tpu.memory_space<vmem>>) attributes {dimension_semantics = [#tpu.dimension_semantics<parallel>], iteration_bounds = array<i64: 1>, scalar_prefetch = 1 : i64, scratch_operands = 0 : i64, tpu.core_type = #tpu.core_type<tc>, window_params = [{transform_indices = @transform_0, window_bounds = array<i64: 128, 16>}, {pipeline_mode = #tpu.pipeline_mode<synchronous>, transform_indices = @transform_1, window_bounds = array<i64: 16, 32>}, {pipeline_mode = #tpu.pipeline_mode<synchronous>, transform_indices = @transform_2, window_bounds = array<i64: 1, 32>}, {transform_indices = @transform_3, window_bounds = array<i64: 128, 32>}]} {
    %c0 = arith.constant 0 : index
    %c0_0 = arith.constant 0 : index
    %0 = vector.load %arg2[%c0, %c0_0] : memref<128x16xbf16, #tpu.memory_space<vmem>>, vector<128x16xbf16>
    %c0_1 = arith.constant 0 : index
    %c0_2 = arith.constant 0 : index
    %1 = vector.load %arg3[%c0_1, %c0_2] : memref<16x32xbf16, #tpu.memory_space<vmem>>, vector<16x32xbf16>
    %cst = arith.constant dense<0.000000e+00> : vector<128x32xf32>
    %2 = tpu.matmul %0, %1, %cst {dimension_numbers = #tpu.dot_dimension_numbers<[1], [0], [0], [1], [0, 0, 1, 1], [], []>} : vector<128x16xbf16>, vector<16x32xbf16>, vector<128x32xf32> -> vector<128x32xf32>
    %c0_3 = arith.constant 0 : index
    %c0_4 = arith.constant 0 : index
    %3 = vector.load %arg4[%c0_3, %c0_4] : memref<1x32xf32, #tpu.memory_space<vmem>>, vector<1x32xf32>
    %4 = vector.broadcast %3 : vector<1x32xf32> to vector<128x32xf32>
    %5 = arith.addf %2, %4 : vector<128x32xf32>
    %cst_5 = arith.constant 0.000000e+00 : f32
    %6 = vector.broadcast %cst_5 : f32 to vector<128x32xf32>
    %7 = arith.maximumf %5, %6 : vector<128x32xf32>
    %c128_i32 = arith.constant 128 : i32
    %8 = arith.muli %arg0, %c128_i32 : i32
    %c0_6 = arith.constant 0 : index
    %9 = memref.load %arg1[%c0_6] : memref<1xi32, #tpu.memory_space<smem>>
    %10 = tpu.iota {dimensions = array<i32: 0>} : vector<128x32xi32>
    %11 = vector.broadcast %8 : i32 to vector<128x32xi32>
    %12 = arith.addi %10, %11 : vector<128x32xi32>
    %13 = tpu.iota {dimensions = array<i32: 1>} : vector<128x32xi32>
    %c32_i32 = arith.constant 32 : i32
    %14 = vector.broadcast %c32_i32 : i32 to vector<128x32xi32>
    %15 = arith.muli %12, %14 : vector<128x32xi32>
    %16 = arith.addi %15, %13 : vector<128x32xi32>
    %c-1640531535_i32 = arith.constant -1640531535 : i32
    %17 = arith.muli %9, %c-1640531535_i32 : i32
    %18 = vector.broadcast %17 : i32 to vector<128x32xi32>
    %19 = arith.addi %16, %18 : vector<128x32xi32>
    %c16_i32 = arith.constant 16 : i32
    %20 = vector.broadcast %c16_i32 : i32 to vector<128x32xi32>
    %21 = arith.shrui %19, %20 : vector<128x32xi32>
    %22 = arith.xori %19, %21 : vector<128x32xi32>
    %c2146121005_i32 = arith.constant 2146121005 : i32
    %23 = vector.broadcast %c2146121005_i32 : i32 to vector<128x32xi32>
    %24 = arith.muli %22, %23 : vector<128x32xi32>
    %c15_i32 = arith.constant 15 : i32
    %25 = vector.broadcast %c15_i32 : i32 to vector<128x32xi32>
    %26 = arith.shrui %24, %25 : vector<128x32xi32>
    %27 = arith.xori %24, %26 : vector<128x32xi32>
    %c-2073254261_i32 = arith.constant -2073254261 : i32
    %28 = vector.broadcast %c-2073254261_i32 : i32 to vector<128x32xi32>
    %29 = arith.muli %27, %28 : vector<128x32xi32>
    %c16_i32_7 = arith.constant 16 : i32
    %30 = vector.broadcast %c16_i32_7 : i32 to vector<128x32xi32>
    %31 = arith.shrui %29, %30 : vector<128x32xi32>
    %32 = arith.xori %29, %31 : vector<128x32xi32>
    %c31_i32 = arith.constant 31 : i32
    %33 = vector.broadcast %c31_i32 : i32 to vector<128x32xi32>
    %34 = arith.shrui %32, %33 : vector<128x32xi32>
    %c0_i32 = arith.constant 0 : i32
    %35 = vector.broadcast %c0_i32 : i32 to vector<128x32xi32>
    %36 = arith.cmpi ne, %34, %35 : vector<128x32xi32>
    %37 = arith.addf %7, %7 : vector<128x32xf32>
    %cst_8 = arith.constant 0.000000e+00 : f32
    %38 = vector.broadcast %cst_8 : f32 to vector<128x32xf32>
    %39 = arith.select %36, %37, %38 : vector<128x32xi1>, vector<128x32xf32>
    %40 = arith.truncf %39 : vector<128x32xf32> to vector<128x32xbf16>
    %c0_9 = arith.constant 0 : index
    %c0_10 = arith.constant 0 : index
    %41 = vector.load %arg5[%c0_9, %c0_10] : memref<128x32xbf16, #tpu.memory_space<vmem>>, vector<128x32xbf16>
    tpu.vector_store %arg5[%c0_9, %c0_10], %40 {strides = array<i32>} : memref<128x32xbf16, #tpu.memory_space<vmem>>, vector<128x32xbf16>,
    return
  }
  func.func @transform_0(%arg0: i32, %arg1: memref<1xi32, #tpu.memory_space<smem>>) -> (i32, i32) {
    %c0_i32 = arith.constant 0 : i32
    %c0_i32_0 = arith.constant 0 : i32
    return %arg0, %c0_i32 : i32, i32
  }
  func.func @transform_1(%arg0: i32, %arg1: memref<1xi32, #tpu.memory_space<smem>>) -> (i32, i32) {
    %c0_i32 = arith.constant 0 : i32
    %c0_i32_0 = arith.constant 0 : i32
    %c0_i32_1 = arith.constant 0 : i32
    return %c0_i32, %c0_i32_0 : i32, i32
  }
  func.func @transform_2(%arg0: i32, %arg1: memref<1xi32, #tpu.memory_space<smem>>) -> (i32, i32) {
    %c0_i32 = arith.constant 0 : i32
    %c0_i32_0 = arith.constant 0 : i32
    %c0_i32_1 = arith.constant 0 : i32
    return %c0_i32, %c0_i32_0 : i32, i32
  }
  func.func @transform_3(%arg0: i32, %arg1: memref<1xi32, #tpu.memory_space<smem>>) -> (i32, i32) {
    %c0_i32 = arith.constant 0 : i32
    %c0_i32_0 = arith.constant 0 : i32
    return %arg0, %c0_i32 : i32, i32
  }
}

</mosaic_0001>

<llo_original>
// kernel: _fedgcn_forward_jit.2
$region0: #{_fedgcn_forward_jit.2}
  #allocation0 [shape = 'u32[]', space=smem, size = 0x4, offset = 0x4, fixed_abs, tag = 'smem constant byte address 0x4 - core index']
  #allocation1 [shape = 'u32[144,128]{1,0:T(1,128)}', space=vmem, size = 0x12000, scoped, tag = 'internal scratch']
  #allocation2 [shape = 's32[1]{0}', space=sflag, size = 0x4, scoped, tag = 'scoped memory for _fedgcn_forward_jit.2']
  #allocation3 [shape = 's32[1]{0:T(128)S(6)}', space=smem, size = 0x200, scoped, tag = 'prefetched SMEM operand 0']
  %s0 = inlined_call_operand.<no memory space> [shape: s32[1], index: 0, kind: input, shape index: {}]
  %s1 = inlined_call_operand.vmem [shape: bf16[128,16], index: 1, kind: input, shape index: {}]
  %s2 = inlined_call_operand.vmem [shape: bf16[16,32], index: 2, kind: input, shape index: {}]
  %s3 = inlined_call_operand.vmem [shape: f32[1,32], index: 3, kind: input, shape index: {}]
  %s4 = inlined_call_operand.vmem [shape: bf16[128,32], index: 4, kind: output, shape index: {}]
  %s5 = sld [smem:[#allocation0]]
  $region22: #{_fedgcn_forward_jit.2} parent=0
    _
  %s7 = ssub.s32 1, %s5
  %s8 = scalar_select 0, %s7, %s5
  %9 = sst [smem:[#allocation3]] %s0
  // Predicated region
  $region2: #{_fedgcn_forward_jit.2} parent=0 // pred_check
    _
  $region3: #{_fedgcn_forward_jit.2} parent=0 // pred_check_branch
    %11 = sbr.rel (0) target = $region5
  $region4: #{_fedgcn_forward_jit.2} parent=0 // pred_region
    _
  $region5: #{_fedgcn_forward_jit.2} parent=0 // pred_fallthru
    _
  // Predicated region
  $region6: #{_fedgcn_forward_jit.2} parent=0 // pred_check
    _
  $region7: #{_fedgcn_forward_jit.2} parent=0 // pred_check_branch
    %13 = sbr.rel (0) target = $region9
  $region8: #{_fedgcn_forward_jit.2} parent=0 // pred_region
    _
  $region9: #{_fedgcn_forward_jit.2} parent=0 // pred_fallthru
    _
  // Predicated region
  $region10: #{_fedgcn_forward_jit.2} parent=0 // pred_check
    _
  $region11: #{_fedgcn_forward_jit.2} parent=0 // pred_check_branch
    %15 = sbr.rel (0) target = $region13
  $region12: #{_fedgcn_forward_jit.2} parent=0 // pred_region
    _
  $region13: #{_fedgcn_forward_jit.2} parent=0 // pred_fallthru
    _
  %v17 = vld [vmem:[%s1] sm:$0xf]
  %v18 = vld [vmem:[%s1 + $0x4] sm:$0xf]
  %v19 = vld [vmem:[%s1 + $0x8] sm:$0xf]
  %v20 = vld [vmem:[%s1 + $0xc] sm:$0xf]
  %v21 = vld [vmem:[%s1 + $0x10] sm:$0xf]
  %v22 = vld [vmem:[%s1 + $0x14] sm:$0xf]
  %v23 = vld [vmem:[%s1 + $0x18] sm:$0xf]
  %v24 = vld [vmem:[%s1 + $0x1c] sm:$0xf]
  %v25 = vld [vmem:[%s1 + $0x20] sm:$0xf]
  %v26 = vld [vmem:[%s1 + $0x24] sm:$0xf]
  %v27 = vld [vmem:[%s1 + $0x28] sm:$0xf]
  %v28 = vld [vmem:[%s1 + $0x2c] sm:$0xf]
  %v29 = vld [vmem:[%s1 + $0x30] sm:$0xf]
  %v30 = vld [vmem:[%s1 + $0x34] sm:$0xf]
  %v31 = vld [vmem:[%s1 + $0x38] sm:$0xf]
  %v32 = vld [vmem:[%s1 + $0x3c] sm:$0xf]
  %v33 = vld [vmem:[%s2] sm:$0xf]
  %v34 = vld [vmem:[%s2 + $0x4] sm:$0xf]
  %v35 = vld [vmem:[%s3] sm:$0x1]
  %v37 = vlaneseq
  %v38 = vshrl.u32 %v37, 7
  %v39 = vsub.s32 0, %v38
  %v40 = vrot.slane %v35, %v39
  %v58 = vunpack.c.l.b16 %v17
  %v59 = vunpack.c.l.b16 %v18
  %v60 = vunpack.c.l.b16 %v19
  %v61 = vunpack.c.l.b16 %v20
  %v62 = vunpack.c.l.b16 %v21
  %v63 = vunpack.c.l.b16 %v22
  %v64 = vunpack.c.l.b16 %v23
  %v65 = vunpack.c.l.b16 %v24
  %v66 = vunpack.c.l.b16 %v25
  %v67 = vunpack.c.l.b16 %v26
  %v68 = vunpack.c.l.b16 %v27
  %v69 = vunpack.c.l.b16 %v28
  %v70 = vunpack.c.l.b16 %v29
  %v71 = vunpack.c.l.b16 %v30
  %v72 = vunpack.c.l.b16 %v31
  %v73 = vunpack.c.l.b16 %v32
  %v74 = vpack.c.b16 %v59, %v58
  %v75 = vpack.c.b16 %v61, %v60
  %v76 = vpack.c.b16 %v63, %v62
  %v77 = vpack.c.b16 %v65, %v64
  %v78 = vpack.c.b16 %v67, %v66
  %v79 = vpack.c.b16 %v69, %v68
  %v80 = vpack.c.b16 %v71, %v70
  %v81 = vpack.c.b16 %v73, %v72
  %v84 = vunpack.c.l.b16 %v33
  %v85 = vunpack.c.l.b16 %v34
  %v86 = vpack.c.b16 %v85, %v84
  %vm88 = vcmask 130048
  %v90 = vsel %vm88, %v74, 0
  %v93 = vsel %vm88, %v75, 0
  %v96 = vsel %vm88, %v76, 0
  %v99 = vsel %vm88, %v77, 0
  %v102 = vsel %vm88, %v78, 0
  %v105 = vsel %vm88, %v79, 0
  %v108 = vsel %vm88, %v80, 0
  %v111 = vsel %vm88, %v81, 0
  %113 = vmatprep.subr.bf16.mxu0 0
  %114 = vmatpush1.bf16.msra.mxu0 0
  %115 = vmatprep.subr.bf16.mxu0 0
  %116 = vmatpush1.bf16.msra.mxu0 0
  %117 = vmatprep.subr.bf16.mxu0 0
  %118 = vmatpush1.bf16.msra.mxu0 0
  %119 = vmatprep.subr.bf16.mxu0 0
  %120 = vmatpush1.bf16.msra.mxu0 0
  %121 = vmatprep.subr.bf16.mxu0 0
  %122 = vmatpush1.bf16.msra.mxu0 0
  %123 = vmatprep.subr.bf16.mxu0 0
  %124 = vmatpush1.bf16.msra.mxu0 0
  %125 = vmatprep.subr.bf16.mxu0 0
  %126 = vmatpush1.bf16.msra.mxu0 0
  %127 = vmatprep.subr.bf16.mxu0 0
  %128 = vmatpush1.bf16.msra.mxu0 %v86
  %129 = vmatprep.subr.bf16.mxu0 0
  %130 = vmatpush2.bf16.msra.mxu0 0
  %131 = vmatprep.subr.bf16.mxu0 0
  %132 = vmatpush2.bf16.msra.mxu0 0
  %133 = vmatprep.subr.bf16.mxu0 0
  %134 = vmatpush2.bf16.msra.mxu0 0
  %135 = vmatprep.subr.bf16.mxu0 0
  %136 = vmatpush2.bf16.msra.mxu0 0
  %137 = vmatprep.subr.bf16.mxu0 0
  %138 = vmatpush2.bf16.msra.mxu0 0
  %139 = vmatprep.subr.bf16.mxu0 0
  %140 = vmatpush2.bf16.msra.mxu0 0
  %141 = vmatprep.subr.bf16.mxu0 0
  %142 = vmatpush2.bf16.msra.mxu0 0
  %143 = vmatprep.subr.bf16.mxu0 0
  %144 = vmatpush2.bf16.msra.mxu0 0
  %145 = vmatprep.mubr.bf16.mxu0 0
  %146 = vmatmul.mubr.bf16.gmra.mxu0 %v90
  %v147 = vpop.f32.mrf.mxu0
  %v148 = vadd.f32 %v40, %v147
  %v149 = vpop.f32.mrf.mxu0
  %v150 = vpop.f32.mrf.mxu0
  %v151 = vadd.f32 %v40, %v150
  %v152 = vpop.f32.mrf.mxu0
  %153 = vmatprep.mubr.bf16.mxu0 0
  %154 = vmatmul.mubr.bf16.gmra.mxu0 %v93
  %v155 = vpop.f32.mrf.mxu0
  %v156 = vadd.f32 %v40, %v155
  %v157 = vpop.f32.mrf.mxu0
  %v158 = vpop.f32.mrf.mxu0
  %v159 = vadd.f32 %v40, %v158
  %v160 = vpop.f32.mrf.mxu0
  %161 = vmatprep.mubr.bf16.mxu0 0
  %162 = vmatmul.mubr.bf16.gmra.mxu0 %v96
  %v163 = vpop.f32.mrf.mxu0
  %v164 = vadd.f32 %v40, %v163
  %v165 = vpop.f32.mrf.mxu0
  %v166 = vpop.f32.mrf.mxu0
  %v167 = vadd.f32 %v40, %v166
  %v168 = vpop.f32.mrf.mxu0
  %169 = vmatprep.mubr.bf16.mxu0 0
  %170 = vmatmul.mubr.bf16.gmra.mxu0 %v99
  %v171 = vpop.f32.mrf.mxu0
  %v172 = vadd.f32 %v40, %v171
  %v173 = vpop.f32.mrf.mxu0
  %v174 = vpop.f32.mrf.mxu0
  %v175 = vadd.f32 %v40, %v174
  %v176 = vpop.f32.mrf.mxu0
  %177 = vmatprep.mubr.bf16.mxu0 0
  %178 = vmatmul.mubr.bf16.gmra.mxu0 %v102
  %v179 = vpop.f32.mrf.mxu0
  %v180 = vadd.f32 %v40, %v179
  %v181 = vpop.f32.mrf.mxu0
  %v182 = vpop.f32.mrf.mxu0
  %v183 = vadd.f32 %v40, %v182
  %v184 = vpop.f32.mrf.mxu0
  %185 = vmatprep.mubr.bf16.mxu0 0
  %186 = vmatmul.mubr.bf16.gmra.mxu0 %v105
  %v187 = vpop.f32.mrf.mxu0
  %v188 = vadd.f32 %v40, %v187
  %v189 = vpop.f32.mrf.mxu0
  %v190 = vpop.f32.mrf.mxu0
  %v191 = vadd.f32 %v40, %v190
  %v192 = vpop.f32.mrf.mxu0
  %193 = vmatprep.mubr.bf16.mxu0 0
  %194 = vmatmul.mubr.bf16.gmra.mxu0 %v108
  %v195 = vpop.f32.mrf.mxu0
  %v196 = vadd.f32 %v40, %v195
  %v197 = vpop.f32.mrf.mxu0
  %v198 = vpop.f32.mrf.mxu0
  %v199 = vadd.f32 %v40, %v198
  %v200 = vpop.f32.mrf.mxu0
  %201 = vmatprep.mubr.bf16.mxu0 0
  %202 = vmatmul.mubr.bf16.gmra.mxu0 %v111
  %v203 = vpop.f32.mrf.mxu0
  %v204 = vadd.f32 %v40, %v203
  %v205 = vpop.f32.mrf.mxu0
  %v206 = vpop.f32.mrf.mxu0
  %v207 = vadd.f32 %v40, %v206
  %v208 = vpop.f32.mrf.mxu0
  %209 = vdwg.mxu0
  %v210 = vmax.f32 %v148, 0.0
  %v211 = vmax.f32 %v151, 0.0
  %v212 = vmax.f32 %v156, 0.0
  %v213 = vmax.f32 %v159, 0.0
  %v214 = vmax.f32 %v164, 0.0
  %v215 = vmax.f32 %v167, 0.0
  %v216 = vmax.f32 %v172, 0.0
  %v217 = vmax.f32 %v175, 0.0
  %v218 = vmax.f32 %v180, 0.0
  %v219 = vmax.f32 %v183, 0.0
  %v220 = vmax.f32 %v188, 0.0
  %v221 = vmax.f32 %v191, 0.0
  %v222 = vmax.f32 %v196, 0.0
  %v223 = vmax.f32 %v199, 0.0
  %v224 = vmax.f32 %v204, 0.0
  %v225 = vmax.f32 %v207, 0.0
  %s226 = smul.u32 0, 128
  %s227 = sld [smem:[#allocation3]]
  %v228 = vlaneseq
  %v229 = vshrl.u32 %v228, 7
  %v230 = vadd.s32 %v229, 8
  %v231 = vadd.s32 %v229, 16
  %v232 = vadd.s32 %v229, 24
  %v233 = vadd.s32 %v229, 32
  %v234 = vadd.s32 %v229, 40
  %v235 = vadd.s32 %v229, 48
  %v236 = vadd.s32 %v229, 56
  %v237 = vadd.s32 %v229, 64
  %v238 = vadd.s32 %v229, 72
  %v239 = vadd.s32 %v229, 80
  %v240 = vadd.s32 %v229, 88
  %v241 = vadd.s32 %v229, 96
  %v242 = vadd.s32 %v229, 104
  %v243 = vadd.s32 %v229, 112
  %v244 = vadd.s32 %v229, 120
  %v245 = vstv %s226
  %v246 = vadd.s32 %v229, %v245
  %v247 = vadd.s32 %v230, %v245
  %v248 = vadd.s32 %v231, %v245
  %v249 = vadd.s32 %v232, %v245
  %v250 = vadd.s32 %v233, %v245
  %v251 = vadd.s32 %v234, %v245
  %v252 = vadd.s32 %v235, %v245
  %v253 = vadd.s32 %v236, %v245
  %v254 = vadd.s32 %v237, %v245
  %v255 = vadd.s32 %v238, %v245
  %v256 = vadd.s32 %v239, %v245
  %v257 = vadd.s32 %v240, %v245
  %v258 = vadd.s32 %v241, %v245
  %v259 = vadd.s32 %v242, %v245
  %v260 = vadd.s32 %v243, %v245
  %v261 = vadd.s32 %v244, %v245
  %v262 = vlaneseq
  %v263 = vand.u32 %v262, 127
  %v264 = vmul.u32 %v246, 32
  %v265 = vmul.u32 %v247, 32
  %v266 = vmul.u32 %v248, 32
  %v267 = vmul.u32 %v249, 32
  %v268 = vmul.u32 %v250, 32
  %v269 = vmul.u32 %v251, 32
  %v270 = vmul.u32 %v252, 32
  %v271 = vmul.u32 %v253, 32
  %v272 = vmul.u32 %v254, 32
  %v273 = vmul.u32 %v255, 32
  %v274 = vmul.u32 %v256, 32
  %v275 = vmul.u32 %v257, 32
  %v276 = vmul.u32 %v258, 32
  %v277 = vmul.u32 %v259, 32
  %v278 = vmul.u32 %v260, 32
  %v279 = vmul.u32 %v261, 32
  %v280 = vadd.s32 %v264, %v263
  %v281 = vadd.s32 %v265, %v263
  %v282 = vadd.s32 %v266, %v263
  %v283 = vadd.s32 %v267, %v263
  %v284 = vadd.s32 %v268, %v263
  %v285 = vadd.s32 %v269, %v263
  %v286 = vadd.s32 %v270, %v263
  %v287 = vadd.s32 %v271, %v263
  %v288 = vadd.s32 %v272, %v263
  %v289 = vadd.s32 %v273, %v263
  %v290 = vadd.s32 %v274, %v263
  %v291 = vadd.s32 %v275, %v263
  %v292 = vadd.s32 %v276, %v263
  %v293 = vadd.s32 %v277, %v263
  %v294 = vadd.s32 %v278, %v263
  %v295 = vadd.s32 %v279, %v263
  %s296 = smul.u32 %s227, 2654435761
  %v297 = vstv %s296
  %v298 = vadd.s32 %v280, %v297
  %v299 = vadd.s32 %v281, %v297
  %v300 = vadd.s32 %v282, %v297
  %v301 = vadd.s32 %v283, %v297
  %v302 = vadd.s32 %v284, %v297
  %v303 = vadd.s32 %v285, %v297
  %v304 = vadd.s32 %v286, %v297
  %v305 = vadd.s32 %v287, %v297
  %v306 = vadd.s32 %v288, %v297
  %v307 = vadd.s32 %v289, %v297
  %v308 = vadd.s32 %v290, %v297
  %v309 = vadd.s32 %v291, %v297
  %v310 = vadd.s32 %v292, %v297
  %v311 = vadd.s32 %v293, %v297
  %v312 = vadd.s32 %v294, %v297
  %v313 = vadd.s32 %v295, %v297
  %v314 = vshrl.u32 %v298, 16
  %v315 = vshrl.u32 %v299, 16
  %v316 = vshrl.u32 %v300, 16
  %v317 = vshrl.u32 %v301, 16
  %v318 = vshrl.u32 %v302, 16
  %v319 = vshrl.u32 %v303, 16
  %v320 = vshrl.u32 %v304, 16
  %v321 = vshrl.u32 %v305, 16
  %v322 = vshrl.u32 %v306, 16
  %v323 = vshrl.u32 %v307, 16
  %v324 = vshrl.u32 %v308, 16
  %v325 = vshrl.u32 %v309, 16
  %v326 = vshrl.u32 %v310, 16
  %v327 = vshrl.u32 %v311, 16
  %v328 = vshrl.u32 %v312, 16
  %v329 = vshrl.u32 %v313, 16
  %v330 = vxor.u32 %v298, %v314
  %v331 = vxor.u32 %v299, %v315
  %v332 = vxor.u32 %v300, %v316
  %v333 = vxor.u32 %v301, %v317
  %v334 = vxor.u32 %v302, %v318
  %v335 = vxor.u32 %v303, %v319
  %v336 = vxor.u32 %v304, %v320
  %v337 = vxor.u32 %v305, %v321
  %v338 = vxor.u32 %v306, %v322
  %v339 = vxor.u32 %v307, %v323
  %v340 = vxor.u32 %v308, %v324
  %v341 = vxor.u32 %v309, %v325
  %v342 = vxor.u32 %v310, %v326
  %v343 = vxor.u32 %v311, %v327
  %v344 = vxor.u32 %v312, %v328
  %v345 = vxor.u32 %v313, %v329
  %v346 = vmul.u32 %v330, 2146121005
  %v347 = vmul.u32 %v331, 2146121005
  %v348 = vmul.u32 %v332, 2146121005
  %v349 = vmul.u32 %v333, 2146121005
  %v350 = vmul.u32 %v334, 2146121005
  %v351 = vmul.u32 %v335, 2146121005
  %v352 = vmul.u32 %v336, 2146121005
  %v353 = vmul.u32 %v337, 2146121005
  %v354 = vmul.u32 %v338, 2146121005
  %v355 = vmul.u32 %v339, 2146121005
  %v356 = vmul.u32 %v340, 2146121005
  %v357 = vmul.u32 %v341, 2146121005
  %v358 = vmul.u32 %v342, 2146121005
  %v359 = vmul.u32 %v343, 2146121005
  %v360 = vmul.u32 %v344, 2146121005
  %v361 = vmul.u32 %v345, 2146121005
  %v362 = vshrl.u32 %v346, 15
  %v363 = vshrl.u32 %v347, 15
  %v364 = vshrl.u32 %v348, 15
  %v365 = vshrl.u32 %v349, 15
  %v366 = vshrl.u32 %v350, 15
  %v367 = vshrl.u32 %v351, 15
  %v368 = vshrl.u32 %v352, 15
  %v369 = vshrl.u32 %v353, 15
  %v370 = vshrl.u32 %v354, 15
  %v371 = vshrl.u32 %v355, 15
  %v372 = vshrl.u32 %v356, 15
  %v373 = vshrl.u32 %v357, 15
  %v374 = vshrl.u32 %v358, 15
  %v375 = vshrl.u32 %v359, 15
  %v376 = vshrl.u32 %v360, 15
  %v377 = vshrl.u32 %v361, 15
  %v378 = vxor.u32 %v346, %v362
  %v379 = vxor.u32 %v347, %v363
  %v380 = vxor.u32 %v348, %v364
  %v381 = vxor.u32 %v349, %v365
  %v382 = vxor.u32 %v350, %v366
  %v383 = vxor.u32 %v351, %v367
  %v384 = vxor.u32 %v352, %v368
  %v385 = vxor.u32 %v353, %v369
  %v386 = vxor.u32 %v354, %v370
  %v387 = vxor.u32 %v355, %v371
  %v388 = vxor.u32 %v356, %v372
  %v389 = vxor.u32 %v357, %v373
  %v390 = vxor.u32 %v358, %v374
  %v391 = vxor.u32 %v359, %v375
  %v392 = vxor.u32 %v360, %v376
  %v393 = vxor.u32 %v361, %v377
  %v394 = vmul.u32 %v378, 2221713035
  %v395 = vmul.u32 %v379, 2221713035
  %v396 = vmul.u32 %v380, 2221713035
  %v397 = vmul.u32 %v381, 2221713035
  %v398 = vmul.u32 %v382, 2221713035
  %v399 = vmul.u32 %v383, 2221713035
  %v400 = vmul.u32 %v384, 2221713035
  %v401 = vmul.u32 %v385, 2221713035
  %v402 = vmul.u32 %v386, 2221713035
  %v403 = vmul.u32 %v387, 2221713035
  %v404 = vmul.u32 %v388, 2221713035
  %v405 = vmul.u32 %v389, 2221713035
  %v406 = vmul.u32 %v390, 2221713035
  %v407 = vmul.u32 %v391, 2221713035
  %v408 = vmul.u32 %v392, 2221713035
  %v409 = vmul.u32 %v393, 2221713035
  %v410 = vshrl.u32 %v394, 16
  %v411 = vshrl.u32 %v395, 16
  %v412 = vshrl.u32 %v396, 16
  %v413 = vshrl.u32 %v397, 16
  %v414 = vshrl.u32 %v398, 16
  %v415 = vshrl.u32 %v399, 16
  %v416 = vshrl.u32 %v400, 16
  %v417 = vshrl.u32 %v401, 16
  %v418 = vshrl.u32 %v402, 16
  %v419 = vshrl.u32 %v403, 16
  %v420 = vshrl.u32 %v404, 16
  %v421 = vshrl.u32 %v405, 16
  %v422 = vshrl.u32 %v406, 16
  %v423 = vshrl.u32 %v407, 16
  %v424 = vshrl.u32 %v408, 16
  %v425 = vshrl.u32 %v409, 16
  %v426 = vxor.u32 %v394, %v410
  %v427 = vxor.u32 %v395, %v411
  %v428 = vxor.u32 %v396, %v412
  %v429 = vxor.u32 %v397, %v413
  %v430 = vxor.u32 %v398, %v414
  %v431 = vxor.u32 %v399, %v415
  %v432 = vxor.u32 %v400, %v416
  %v433 = vxor.u32 %v401, %v417
  %v434 = vxor.u32 %v402, %v418
  %v435 = vxor.u32 %v403, %v419
  %v436 = vxor.u32 %v404, %v420
  %v437 = vxor.u32 %v405, %v421
  %v438 = vxor.u32 %v406, %v422
  %v439 = vxor.u32 %v407, %v423
  %v440 = vxor.u32 %v408, %v424
  %v441 = vxor.u32 %v409, %v425
  %v442 = vshrl.u32 %v426, 31
  %v443 = vshrl.u32 %v427, 31
  %v444 = vshrl.u32 %v428, 31
  %v445 = vshrl.u32 %v429, 31
  %v446 = vshrl.u32 %v430, 31
  %v447 = vshrl.u32 %v431, 31
  %v448 = vshrl.u32 %v432, 31
  %v449 = vshrl.u32 %v433, 31
  %v450 = vshrl.u32 %v434, 31
  %v451 = vshrl.u32 %v435, 31
  %v452 = vshrl.u32 %v436, 31
  %v453 = vshrl.u32 %v437, 31
  %v454 = vshrl.u32 %v438, 31
  %v455 = vshrl.u32 %v439, 31
  %v456 = vshrl.u32 %v440, 31
  %v457 = vshrl.u32 %v441, 31
  %vm458 = vcmp.ne.s32.totalorder %v442, 0
  %vm459 = vcmp.ne.s32.totalorder %v443, 0
  %vm460 = vcmp.ne.s32.totalorder %v444, 0
  %vm461 = vcmp.ne.s32.totalorder %v445, 0
  %vm462 = vcmp.ne.s32.totalorder %v446, 0
  %vm463 = vcmp.ne.s32.totalorder %v447, 0
  %vm464 = vcmp.ne.s32.totalorder %v448, 0
  %vm465 = vcmp.ne.s32.totalorder %v449, 0
  %vm466 = vcmp.ne.s32.totalorder %v450, 0
  %vm467 = vcmp.ne.s32.totalorder %v451, 0
  %vm468 = vcmp.ne.s32.totalorder %v452, 0
  %vm469 = vcmp.ne.s32.totalorder %v453, 0
  %vm470 = vcmp.ne.s32.totalorder %v454, 0
  %vm471 = vcmp.ne.s32.totalorder %v455, 0
  %vm472 = vcmp.ne.s32.totalorder %v456, 0
  %vm473 = vcmp.ne.s32.totalorder %v457, 0
  %v474 = vadd.f32 %v210, %v210
  %v475 = vadd.f32 %v211, %v211
  %v476 = vadd.f32 %v212, %v212
  %v477 = vadd.f32 %v213, %v213
  %v478 = vadd.f32 %v214, %v214
  %v479 = vadd.f32 %v215, %v215
  %v480 = vadd.f32 %v216, %v216
  %v481 = vadd.f32 %v217, %v217
  %v482 = vadd.f32 %v218, %v218
  %v483 = vadd.f32 %v219, %v219
  %v484 = vadd.f32 %v220, %v220
  %v485 = vadd.f32 %v221, %v221
  %v486 = vadd.f32 %v222, %v222
  %v487 = vadd.f32 %v223, %v223
  %v488 = vadd.f32 %v224, %v224
  %v489 = vadd.f32 %v225, %v225
  %v490 = vsel %vm458, %v474, 0.0
  %v491 = vsel %vm459, %v475, 0.0
  %v492 = vsel %vm460, %v476, 0.0
  %v493 = vsel %vm461, %v477, 0.0
  %v494 = vsel %vm462, %v478, 0.0
  %v495 = vsel %vm463, %v479, 0.0
  %v496 = vsel %vm464, %v480, 0.0
  %v497 = vsel %vm465, %v481, 0.0
  %v498 = vsel %vm466, %v482, 0.0
  %v499 = vsel %vm467, %v483, 0.0
  %v500 = vsel %vm468, %v484, 0.0
  %v501 = vsel %vm469, %v485, 0.0
  %v502 = vsel %vm470, %v486, 0.0
  %v503 = vsel %vm471, %v487, 0.0
  %v504 = vsel %vm472, %v488, 0.0
  %v505 = vsel %vm473, %v489, 0.0
  %v506 = vpack.c.bf16 %v491, %v490
  %v507 = vpack.c.bf16 %v493, %v492
  %v508 = vpack.c.bf16 %v495, %v494
  %v509 = vpack.c.bf16 %v497, %v496
  %v510 = vpack.c.bf16 %v499, %v498
  %v511 = vpack.c.bf16 %v501, %v500
  %v512 = vpack.c.bf16 %v503, %v502
  %v513 = vpack.c.bf16 %v505, %v504
  %v522 = vunpack.c.l.b16 %v506
  %v523 = vunpack.c.h.b16 %v506
  %v524 = vunpack.c.l.b16 %v507
  %v525 = vunpack.c.h.b16 %v507
  %v526 = vunpack.c.l.b16 %v508
  %v527 = vunpack.c.h.b16 %v508
  %v528 = vunpack.c.l.b16 %v509
  %v529 = vunpack.c.h.b16 %v509
  %v530 = vunpack.c.l.b16 %v510
  %v531 = vunpack.c.h.b16 %v510
  %v532 = vunpack.c.l.b16 %v511
  %v533 = vunpack.c.h.b16 %v511
  %v534 = vunpack.c.l.b16 %v512
  %v535 = vunpack.c.h.b16 %v512
  %v536 = vunpack.c.l.b16 %v513
  %v537 = vunpack.c.h.b16 %v513
  %v538 = vpack.c.b16 %v522, %v522
  %v539 = vpack.c.b16 %v523, %v523
  %v540 = vpack.c.b16 %v524, %v524
  %v541 = vpack.c.b16 %v525, %v525
  %v542 = vpack.c.b16 %v526, %v526
  %v543 = vpack.c.b16 %v527, %v527
  %v544 = vpack.c.b16 %v528, %v528
  %v545 = vpack.c.b16 %v529, %v529
  %v546 = vpack.c.b16 %v530, %v530
  %v547 = vpack.c.b16 %v531, %v531
  %v548 = vpack.c.b16 %v532, %v532
  %v549 = vpack.c.b16 %v533, %v533
  %v550 = vpack.c.b16 %v534, %v534
  %v551 = vpack.c.b16 %v535, %v535
  %v552 = vpack.c.b16 %v536, %v536
  %v553 = vpack.c.b16 %v537, %v537
  %vm570 = vcmask 257024
  %571 = vst.msk [vmem:[%s4] sm:$0xf] %vm570, %v538
  %572 = vst.msk [vmem:[%s4 + $0x4] sm:$0xf] %vm570, %v539
  %573 = vst.msk [vmem:[%s4 + $0x8] sm:$0xf] %vm570, %v540
  %574 = vst.msk [vmem:[%s4 + $0xc] sm:$0xf] %vm570, %v541
  %575 = vst.msk [vmem:[%s4 + $0x10] sm:$0xf] %vm570, %v542
  %576 = vst.msk [vmem:[%s4 + $0x14] sm:$0xf] %vm570, %v543
  %577 = vst.msk [vmem:[%s4 + $0x18] sm:$0xf] %vm570, %v544
  %578 = vst.msk [vmem:[%s4 + $0x1c] sm:$0xf] %vm570, %v545
  %579 = vst.msk [vmem:[%s4 + $0x20] sm:$0xf] %vm570, %v546
  %580 = vst.msk [vmem:[%s4 + $0x24] sm:$0xf] %vm570, %v547
  %581 = vst.msk [vmem:[%s4 + $0x28] sm:$0xf] %vm570, %v548
  %582 = vst.msk [vmem:[%s4 + $0x2c] sm:$0xf] %vm570, %v549
  %583 = vst.msk [vmem:[%s4 + $0x30] sm:$0xf] %vm570, %v550
  %584 = vst.msk [vmem:[%s4 + $0x34] sm:$0xf] %vm570, %v551
  %585 = vst.msk [vmem:[%s4 + $0x38] sm:$0xf] %vm570, %v552
  %586 = vst.msk [vmem:[%s4 + $0x3c] sm:$0xf] %vm570, %v553
  // Predicated region
  $region14: #{_fedgcn_forward_jit.2} parent=0 // pred_check
    _
  $region15: #{_fedgcn_forward_jit.2} parent=0 // pred_check_branch
    %588 = sbr.rel (0) target = $region17
  $region16: #{_fedgcn_forward_jit.2} parent=0 // pred_region
    _
  $region17: #{_fedgcn_forward_jit.2} parent=0 // pred_fallthru
    _
  // Predicated region
  $region18: #{_fedgcn_forward_jit.2} parent=0 // pred_check
    _
  $region19: #{_fedgcn_forward_jit.2} parent=0 // pred_check_branch
    %590 = sbr.rel (0) target = $region21
  $region20: #{_fedgcn_forward_jit.2} parent=0 // pred_region
    _
  $region21: #{_fedgcn_forward_jit.2} parent=0 // pred_fallthru
    _

// kernel: _fedgcn_forward_jit.3
$region0: #{_fedgcn_forward_jit.3}
  #allocation0 [shape = 'u32[]', space=smem, size = 0x4, offset = 0x4, fixed_abs, tag = 'smem constant byte address 0x4 - core index']
  #allocation1 [shape = 'u32[144,128]{1,0:T(1,128)}', space=vmem, size = 0x12000, scoped, tag = 'internal scratch']
  #allocation2 [shape = 'f32[128,32]{1,0:T(8,128)}', space=vmem, size = 0x10000, scoped, tag = 'scratch operand']
  %s0 = inlined_call_operand.vmem [shape: bf16[128,128], index: 0, kind: input, shape index: {}]
  %s1 = inlined_call_operand.vmem [shape: bf16[128,32], index: 1, kind: input, shape index: {}]
  %s2 = inlined_call_operand.vmem [shape: f32[32,8], index: 2, kind: input, shape index: {}]
  %s3 = inlined_call_operand.vmem [shape: f32[1,8], index: 3, kind: input, shape index: {}]
  %s4 = inlined_call_operand.vmem [shape: f32[128,8], index: 4, kind: output, shape index: {}]
  %s5 = sld [smem:[#allocation0]]
  $region34: #{_fedgcn_forward_jit.3} parent=0
    _
  %s7 = ssub.s32 1, %s5
  %s8 = scalar_select 0, %s7, %s5
  // Predicated region
  $region2: #{_fedgcn_forward_jit.3} parent=0 // pred_check
    _
  $region3: #{_fedgcn_forward_jit.3} parent=0 // pred_check_branch
    %10 = sbr.rel (0) target = $region5
  $region4: #{_fedgcn_forward_jit.3} parent=0 // pred_region
    _
  $region5: #{_fedgcn_forward_jit.3} parent=0 // pred_fallthru
    _
  // Predicated region
  $region6: #{_fedgcn_forward_jit.3} parent=0 // pred_check
    _
  $region7: #{_fedgcn_forward_jit.3} parent=0 // pred_check_branch
    %12 = sbr.rel (0) target = $region9
  $region8: #{_fedgcn_forward_jit.3} parent=0 // pred_region
    _
  $region9: #{_fedgcn_forward_jit.3} parent=0 // pred_fallthru
    _
  // Predicated region
  $region10: #{_fedgcn_forward_jit.3} parent=0 // pred_check
    _
  $region11: #{_fedgcn_forward_jit.3} parent=0 // pred_check_branch
    %14 = sbr.rel (0) target = $region13
  $region12: #{_fedgcn_forward_jit.3} parent=0 // pred_region
    _
  $region13: #{_fedgcn_forward_jit.3} parent=0 // pred_fallthru
    _
  // Predicated region
  $region14: #{_fedgcn_forward_jit.3} parent=0 // pred_check
    _
  $region15: #{_fedgcn_forward_jit.3} parent=0 // pred_check_branch
    %16 = sbr.rel (0) target = $region17
  $region16: #{_fedgcn_forward_jit.3} parent=0 // pred_region
    _
  $region17: #{_fedgcn_forward_jit.3} parent=0 // pred_fallthru
    _
  %p18 = scmp.eq.s32.totalorder 0, 0
  // Predicated region
  $region18: #{_fedgcn_forward_jit.3} parent=0 // pred_check
    %p19 = pneg %p18
  $region19: #{_fedgcn_forward_jit.3} parent=0 // pred_check_branch
    %21 = sbr.rel (%p19) target = $region21
  $region20: #{_fedgcn_forward_jit.3} parent=0 // pred_region
    %vm22 = vcmask 261120
    %23 = vst.msk [vmem:[#allocation2] sm:$0xff] %vm22, 0.0
    %24 = vst.msk [vmem:[#allocation2 + $0x8] sm:$0xff] %vm22, 0.0
    %25 = vst.msk [vmem:[#allocation2 + $0x10] sm:$0xff] %vm22, 0.0
    %26 = vst.msk [vmem:[#allocation2 + $0x18] sm:$0xff] %vm22, 0.0
    %27 = vst.msk [vmem:[#allocation2 + $0x20] sm:$0xff] %vm22, 0.0
    %28 = vst.msk [vmem:[#allocation2 + $0x28] sm:$0xff] %vm22, 0.0
    %29 = vst.msk [vmem:[#allocation2 + $0x30] sm:$0xff] %vm22, 0.0
    %30 = vst.msk [vmem:[#allocation2 + $0x38] sm:$0xff] %vm22, 0.0
    %31 = vst.msk [vmem:[#allocation2 + $0x40] sm:$0xff] %vm22, 0.0
    %32 = vst.msk [vmem:[#allocation2 + $0x48] sm:$0xff] %vm22, 0.0
    %33 = vst.msk [vmem:[#allocation2 + $0x50] sm:$0xff] %vm22, 0.0
    %34 = vst.msk [vmem:[#allocation2 + $0x58] sm:$0xff] %vm22, 0.0
    %35 = vst.msk [vmem:[#allocation2 + $0x60] sm:$0xff] %vm22, 0.0
    %36 = vst.msk [vmem:[#allocation2 + $0x68] sm:$0xff] %vm22, 0.0
    %37 = vst.msk [vmem:[#allocation2 + $0x70] sm:$0xff] %vm22, 0.0
    %38 = vst.msk [vmem:[#allocation2 + $0x78] sm:$0xff] %vm22, 0.0
  $region21: #{_fedgcn_forward_jit.3} parent=0 // pred_fallthru
    _
  %v39 = vld [vmem:[#allocation2] sm:$0xff]
  %v40 = vld [vmem:[#allocation2 + $0x8] sm:$0xff]
  %v41 = vld [vmem:[#allocation2 + $0x10] sm:$0xff]
  %v42 = vld [vmem:[#allocation2 + $0x18] sm:$0xff]
  %v43 = vld [vmem:[#allocation2 + $0x20] sm:$0xff]
  %v44 = vld [vmem:[#allocation2 + $0x28] sm:$0xff]
  %v45 = vld [vmem:[#allocation2 + $0x30] sm:$0xff]
  %v46 = vld [vmem:[#allocation2 + $0x38] sm:$0xff]
  %v47 = vld [vmem:[#allocation2 + $0x40] sm:$0xff]
  %v48 = vld [vmem:[#allocation2 + $0x48] sm:$0xff]
  %v49 = vld [vmem:[#allocation2 + $0x50] sm:$0xff]
  %v50 = vld [vmem:[#allocation2 + $0x58] sm:$0xff]
  %v51 = vld [vmem:[#allocation2 + $0x60] sm:$0xff]
  %v52 = vld [vmem:[#allocation2 + $0x68] sm:$0xff]
  %v53 = vld [vmem:[#allocation2 + $0x70] sm:$0xff]
  %v54 = vld [vmem:[#allocation2 + $0x78] sm:$0xff]
  %v55 = vld [vmem:[%s0] sm:$0xf]
  %v56 = vld [vmem:[%s0 + $0x4] sm:$0xf]
  %v57 = vld [vmem:[%s0 + $0x8] sm:$0xf]
  %v58 = vld [vmem:[%s0 + $0xc] sm:$0xf]
  %v59 = vld [vmem:[%s0 + $0x10] sm:$0xf]
  %v60 = vld [vmem:[%s0 + $0x14] sm:$0xf]
  %v61 = vld [vmem:[%s0 + $0x18] sm:$0xf]
  %v62 = vld [vmem:[%s0 + $0x1c] sm:$0xf]
  %v63 = vld [vmem:[%s0 + $0x20] sm:$0xf]
  %v64 = vld [vmem:[%s0 + $0x24] sm:$0xf]
  %v65 = vld [vmem:[%s0 + $0x28] sm:$0xf]
  %v66 = vld [vmem:[%s0 + $0x2c] sm:$0xf]
  %v67 = vld [vmem:[%s0 + $0x30] sm:$0xf]
  %v68 = vld [vmem:[%s0 + $0x34] sm:$0xf]
  %v69 = vld [vmem:[%s0 + $0x38] sm:$0xf]
  %v70 = vld [vmem:[%s0 + $0x3c] sm:$0xf]
  %v71 = vld [vmem:[%s1] sm:$0xf]
  %v72 = vld [vmem:[%s1 + $0x4] sm:$0xf]
  %v73 = vld [vmem:[%s1 + $0x8] sm:$0xf]
  %v74 = vld [vmem:[%s1 + $0xc] sm:$0xf]
  %v75 = vld [vmem:[%s1 + $0x10] sm:$0xf]
  %v76 = vld [vmem:[%s1 + $0x14] sm:$0xf]
  %v77 = vld [vmem:[%s1 + $0x18] sm:$0xf]
  %v78 = vld [vmem:[%s1 + $0x1c] sm:$0xf]
  %v79 = vld [vmem:[%s1 + $0x20] sm:$0xf]
  %v80 = vld [vmem:[%s1 + $0x24] sm:$0xf]
  %v81 = vld [vmem:[%s1 + $0x28] sm:$0xf]
  %v82 = vld [vmem:[%s1 + $0x2c] sm:$0xf]
  %v83 = vld [vmem:[%s1 + $0x30] sm:$0xf]
  %v84 = vld [vmem:[%s1 + $0x34] sm:$0xf]
  %v85 = vld [vmem:[%s1 + $0x38] sm:$0xf]
  %v86 = vld [vmem:[%s1 + $0x3c] sm:$0xf]
  %v103 = vunpack.c.l.b16 %v55
  %v104 = vunpack.c.l.b16 %v56
  %v105 = vunpack.c.l.b16 %v57
  %v106 = vunpack.c.l.b16 %v58
  %v107 = vunpack.c.l.b16 %v59
  %v108 = vunpack.c.l.b16 %v60
  %v109 = vunpack.c.l.b16 %v61
  %v110 = vunpack.c.l.b16 %v62
  %v111 = vunpack.c.l.b16 %v63
  %v112 = vunpack.c.l.b16 %v64
  %v113 = vunpack.c.l.b16 %v65
  %v114 = vunpack.c.l.b16 %v66
  %v115 = vunpack.c.l.b16 %v67
  %v116 = vunpack.c.l.b16 %v68
  %v117 = vunpack.c.l.b16 %v69
  %v118 = vunpack.c.l.b16 %v70
  %v119 = vpack.c.b16 %v104, %v103
  %v120 = vpack.c.b16 %v106, %v105
  %v121 = vpack.c.b16 %v108, %v107
  %v122 = vpack.c.b16 %v110, %v109
  %v123 = vpack.c.b16 %v112, %v111
  %v124 = vpack.c.b16 %v114, %v113
  %v125 = vpack.c.b16 %v116, %v115
  %v126 = vpack.c.b16 %v118, %v117
  %v151 = vunpack.c.l.b16 %v71
  %v152 = vunpack.c.l.b16 %v72
  %v153 = vunpack.c.l.b16 %v73
  %v154 = vunpack.c.l.b16 %v74
  %v155 = vunpack.c.l.b16 %v75
  %v156 = vunpack.c.l.b16 %v76
  %v157 = vunpack.c.l.b16 %v77
  %v158 = vunpack.c.l.b16 %v78
  %v159 = vunpack.c.l.b16 %v79
  %v160 = vunpack.c.l.b16 %v80
  %v161 = vunpack.c.l.b16 %v81
  %v162 = vunpack.c.l.b16 %v82
  %v163 = vunpack.c.l.b16 %v83
  %v164 = vunpack.c.l.b16 %v84
  %v165 = vunpack.c.l.b16 %v85
  %v166 = vunpack.c.l.b16 %v86
  %v167 = vpack.c.b16 %v152, %v151
  %v168 = vpack.c.b16 %v154, %v153
  %v169 = vpack.c.b16 %v156, %v155
  %v170 = vpack.c.b16 %v158, %v157
  %v171 = vpack.c.b16 %v160, %v159
  %v172 = vpack.c.b16 %v162, %v161
  %v173 = vpack.c.b16 %v164, %v163
  %v174 = vpack.c.b16 %v166, %v165
  %183 = vmatprep.subr.bf16.mxu0 0
  %184 = vmatpush1.bf16.msra.mxu0 %v174
  %185 = vmatprep.subr.bf16.mxu0 0
  %186 = vmatpush1.bf16.msra.mxu0 %v173
  %187 = vmatprep.subr.bf16.mxu0 0
  %188 = vmatpush1.bf16.msra.mxu0 %v172
  %189 = vmatprep.subr.bf16.mxu0 0
  %190 = vmatpush1.bf16.msra.mxu0 %v171
  %191 = vmatprep.subr.bf16.mxu0 0
  %192 = vmatpush1.bf16.msra.mxu0 %v170
  %193 = vmatprep.subr.bf16.mxu0 0
  %194 = vmatpush1.bf16.msra.mxu0 %v169
  %195 = vmatprep.subr.bf16.mxu0 0
  %196 = vmatpush1.bf16.msra.mxu0 %v168
  %197 = vmatprep.subr.bf16.mxu0 0
  %198 = vmatpush1.bf16.msra.mxu0 %v167
  %199 = vmatprep.subr.bf16.mxu0 0
  %200 = vmatpush2.bf16.msra.mxu0 0
  %201 = vmatprep.subr.bf16.mxu0 0
  %202 = vmatpush2.bf16.msra.mxu0 0
  %203 = vmatprep.subr.bf16.mxu0 0
  %204 = vmatpush2.bf16.msra.mxu0 0
  %205 = vmatprep.subr.bf16.mxu0 0
  %206 = vmatpush2.bf16.msra.mxu0 0
  %207 = vmatprep.subr.bf16.mxu0 0
  %208 = vmatpush2.bf16.msra.mxu0 0
  %209 = vmatprep.subr.bf16.mxu0 0
  %210 = vmatpush2.bf16.msra.mxu0 0
  %211 = vmatprep.subr.bf16.mxu0 0
  %212 = vmatpush2.bf16.msra.mxu0 0
  %213 = vmatprep.subr.bf16.mxu0 0
  %214 = vmatpush2.bf16.msra.mxu0 0
  %215 = vmatprep.mubr.bf16.mxu0 0
  %216 = vmatmul.mubr.bf16.gmra.mxu0 %v119
  %v217 = vpop.f32.mrf.mxu0
  %v218 = vadd.f32 0.0, %v217
  %v219 = vpop.f32.mrf.mxu0
  %v220 = vpop.f32.mrf.mxu0
  %v221 = vadd.f32 0.0, %v220
  %v222 = vpop.f32.mrf.mxu0
  %223 = vmatprep.mubr.bf16.mxu0 0
  %224 = vmatmul.mubr.bf16.gmra.mxu0 %v120
  %v225 = vpop.f32.mrf.mxu0
  %v226 = vadd.f32 0.0, %v225
  %v227 = vpop.f32.mrf.mxu0
  %v228 = vpop.f32.mrf.mxu0
  %v229 = vadd.f32 0.0, %v228
  %v230 = vpop.f32.mrf.mxu0
  %231 = vmatprep.mubr.bf16.mxu0 0
  %232 = vmatmul.mubr.bf16.gmra.mxu0 %v121
  %v233 = vpop.f32.mrf.mxu0
  %v234 = vadd.f32 0.0, %v233
  %v235 = vpop.f32.mrf.mxu0
  %v236 = vpop.f32.mrf.mxu0
  %v237 = vadd.f32 0.0, %v236
  %v238 = vpop.f32.mrf.mxu0
  %239 = vmatprep.mubr.bf16.mxu0 0
  %240 = vmatmul.mubr.bf16.gmra.mxu0 %v122
  %v241 = vpop.f32.mrf.mxu0
  %v242 = vadd.f32 0.0, %v241
  %v243 = vpop.f32.mrf.mxu0
  %v244 = vpop.f32.mrf.mxu0
  %v245 = vadd.f32 0.0, %v244
  %v246 = vpop.f32.mrf.mxu0
  %247 = vmatprep.mubr.bf16.mxu0 0
  %248 = vmatmul.mubr.bf16.gmra.mxu0 %v123
  %v249 = vpop.f32.mrf.mxu0
  %v250 = vadd.f32 0.0, %v249
  %v251 = vpop.f32.mrf.mxu0
  %v252 = vpop.f32.mrf.mxu0
  %v253 = vadd.f32 0.0, %v252
  %v254 = vpop.f32.mrf.mxu0
  %255 = vmatprep.mubr.bf16.mxu0 0
  %256 = vmatmul.mubr.bf16.gmra.mxu0 %v124
  %v257 = vpop.f32.mrf.mxu0
  %v258 = vadd.f32 0.0, %v257
  %v259 = vpop.f32.mrf.mxu0
  %v260 = vpop.f32.mrf.mxu0
  %v261 = vadd.f32 0.0, %v260
  %v262 = vpop.f32.mrf.mxu0
  %263 = vmatprep.mubr.bf16.mxu0 0
  %264 = vmatmul.mubr.bf16.gmra.mxu0 %v125
  %v265 = vpop.f32.mrf.mxu0
  %v266 = vadd.f32 0.0, %v265
  %v267 = vpop.f32.mrf.mxu0
  %v268 = vpop.f32.mrf.mxu0
  %v269 = vadd.f32 0.0, %v268
  %v270 = vpop.f32.mrf.mxu0
  %271 = vmatprep.mubr.bf16.mxu0 0
  %272 = vmatmul.mubr.bf16.gmra.mxu0 %v126
  %v273 = vpop.f32.mrf.mxu0
  %v274 = vadd.f32 0.0, %v273
  %v275 = vpop.f32.mrf.mxu0
  %v276 = vpop.f32.mrf.mxu0
  %v277 = vadd.f32 0.0, %v276
  %v278 = vpop.f32.mrf.mxu0
  %279 = vdwg.mxu0
  %v280 = vadd.f32 %v39, %v218
  %v281 = vadd.f32 %v40, %v221
  %v282 = vadd.f32 %v41, %v226
  %v283 = vadd.f32 %v42, %v229
  %v284 = vadd.f32 %v43, %v234
  %v285 = vadd.f32 %v44, %v237
  %v286 = vadd.f32 %v45, %v242
  %v287 = vadd.f32 %v46, %v245
  %v288 = vadd.f32 %v47, %v250
  %v289 = vadd.f32 %v48, %v253
  %v290 = vadd.f32 %v49, %v258
  %v291 = vadd.f32 %v50, %v261
  %v292 = vadd.f32 %v51, %v266
  %v293 = vadd.f32 %v52, %v269
  %v294 = vadd.f32 %v53, %v274
  %v295 = vadd.f32 %v54, %v277
  %vm296 = vcmask 261120
  %297 = vst.msk [vmem:[#allocation2] sm:$0xff] %vm296, %v280
  %298 = vst.msk [vmem:[#allocation2 + $0x8] sm:$0xff] %vm296, %v281
  %299 = vst.msk [vmem:[#allocation2 + $0x10] sm:$0xff] %vm296, %v282
  %300 = vst.msk [vmem:[#allocation2 + $0x18] sm:$0xff] %vm296, %v283
  %301 = vst.msk [vmem:[#allocation2 + $0x20] sm:$0xff] %vm296, %v284
  %302 = vst.msk [vmem:[#allocation2 + $0x28] sm:$0xff] %vm296, %v285
  %303 = vst.msk [vmem:[#allocation2 + $0x30] sm:$0xff] %vm296, %v286
  %304 = vst.msk [vmem:[#allocation2 + $0x38] sm:$0xff] %vm296, %v287
  %305 = vst.msk [vmem:[#allocation2 + $0x40] sm:$0xff] %vm296, %v288
  %306 = vst.msk [vmem:[#allocation2 + $0x48] sm:$0xff] %vm296, %v289
  %307 = vst.msk [vmem:[#allocation2 + $0x50] sm:$0xff] %vm296, %v290
  %308 = vst.msk [vmem:[#allocation2 + $0x58] sm:$0xff] %vm296, %v291
  %309 = vst.msk [vmem:[#allocation2 + $0x60] sm:$0xff] %vm296, %v292
  %310 = vst.msk [vmem:[#allocation2 + $0x68] sm:$0xff] %vm296, %v293
  %311 = vst.msk [vmem:[#allocation2 + $0x70] sm:$0xff] %vm296, %v294
  %312 = vst.msk [vmem:[#allocation2 + $0x78] sm:$0xff] %vm296, %v295
  // Predicated region
  $region22: #{_fedgcn_forward_jit.3} parent=0 // pred_check
    %p313 = pneg %p18
  $region23: #{_fedgcn_forward_jit.3} parent=0 // pred_check_branch
    %315 = sbr.rel (%p313) target = $region25
  $region24: #{_fedgcn_forward_jit.3} parent=0 // pred_region
    %v316 = vld [vmem:[#allocation2] sm:$0xff]
    %v317 = vld [vmem:[#allocation2 + $0x8] sm:$0xff]
    %v318 = vld [vmem:[#allocation2 + $0x10] sm:$0xff]
    %v319 = vld [vmem:[#allocation2 + $0x18] sm:$0xff]
    %v320 = vld [vmem:[#allocation2 + $0x20] sm:$0xff]
    %v321 = vld [vmem:[#allocation2 + $0x28] sm:$0xff]
    %v322 = vld [vmem:[#allocation2 + $0x30] sm:$0xff]
    %v323 = vld [vmem:[#allocation2 + $0x38] sm:$0xff]
    %v324 = vld [vmem:[#allocation2 + $0x40] sm:$0xff]
    %v325 = vld [vmem:[#allocation2 + $0x48] sm:$0xff]
    %v326 = vld [vmem:[#allocation2 + $0x50] sm:$0xff]
    %v327 = vld [vmem:[#allocation2 + $0x58] sm:$0xff]
    %v328 = vld [vmem:[#allocation2 + $0x60] sm:$0xff]
    %v329 = vld [vmem:[#allocation2 + $0x68] sm:$0xff]
    %v330 = vld [vmem:[#allocation2 + $0x70] sm:$0xff]
    %v331 = vld [vmem:[#allocation2 + $0x78] sm:$0xff]
    %v332 = vld [vmem:[%s2] sm:$0xff]
    %v333 = vld [vmem:[%s2 + $0x8] sm:$0xff]
    %v334 = vld [vmem:[%s2 + $0x10] sm:$0xff]
    %v335 = vld [vmem:[%s2 + $0x18] sm:$0xff]
    %v336 = vld [vmem:[%s3] sm:$0x1]
    %v338 = vlaneseq
    %v339 = vshrl.u32 %v338, 7
    %v340 = vsub.s32 0, %v339
    %v341 = vrot.slane %v336, %v340
    %v344 = vsel %vm296, %v316, 0
    %v347 = vsel %vm296, %v317, 0
    %v350 = vsel %vm296, %v318, 0
    %v353 = vsel %vm296, %v319, 0
    %v356 = vsel %vm296, %v320, 0
    %v359 = vsel %vm296, %v321, 0
    %v362 = vsel %vm296, %v322, 0
    %v365 = vsel %vm296, %v323, 0
    %v368 = vsel %vm296, %v324, 0
    %v371 = vsel %vm296, %v325, 0
    %v374 = vsel %vm296, %v326, 0
    %v377 = vsel %vm296, %v327, 0
    %v380 = vsel %vm296, %v328, 0
    %v383 = vsel %vm296, %v329, 0
    %v386 = vsel %vm296, %v330, 0
    %v389 = vsel %vm296, %v331, 0
    %391 = vmatprep.subr.mxu0 0.0
    %392 = vmatpush1.msra.mxu0 0.0
    %393 = vmatprep.subr.mxu0 0.0
    %394 = vmatpush1.msra.mxu0 0.0
    %395 = vmatprep.subr.mxu0 0.0
    %396 = vmatpush1.msra.mxu0 0.0
    %397 = vmatprep.subr.mxu0 0.0
    %398 = vmatpush1.msra.mxu0 0.0
    %399 = vmatprep.subr.mxu0 0.0
    %400 = vmatpush1.msra.mxu0 0.0
    %401 = vmatprep.subr.mxu0 0.0
    %402 = vmatpush1.msra.mxu0 0.0
    %403 = vmatprep.subr.mxu0 0.0
    %404 = vmatpush1.msra.mxu0 0.0
    %405 = vmatprep.subr.mxu0 0.0
    %406 = vmatpush1.msra.mxu0 0.0
    %407 = vmatprep.subr.mxu0 0.0
    %408 = vmatpush1.msra.mxu0 0.0
    %409 = vmatprep.subr.mxu0 0.0
    %410 = vmatpush1.msra.mxu0 0.0
    %411 = vmatprep.subr.mxu0 0.0
    %412 = vmatpush1.msra.mxu0 0.0
    %413 = vmatprep.subr.mxu0 0.0
    %414 = vmatpush1.msra.mxu0 0.0
    %415 = vmatprep.subr.mxu0 0.0
    %416 = vmatpush1.msra.mxu0 %v335
    %417 = vmatprep.subr.mxu0 0.0
    %418 = vmatpush1.msra.mxu0 %v334
    %419 = vmatprep.subr.mxu0 0.0
    %420 = vmatpush1.msra.mxu0 %v333
    %421 = vmatprep.subr.mxu0 0.0
    %422 = vmatpush1.msra.mxu0 %v332
    %423 = vmatprep.subr.mxu0 0.0
    %424 = vmatpush2.msra.mxu0 0.0
    %425 = vmatprep.subr.mxu0 0.0
    %426 = vmatpush2.msra.mxu0 0.0
    %427 = vmatprep.subr.mxu0 0.0
    %428 = vmatpush2.msra.mxu0 0.0
    %429 = vmatprep.subr.mxu0 0.0
    %430 = vmatpush2.msra.mxu0 0.0
    %431 = vmatprep.subr.mxu0 0.0
    %432 = vmatpush2.msra.mxu0 0.0
    %433 = vmatprep.subr.mxu0 0.0
    %434 = vmatpush2.msra.mxu0 0.0
    %435 = vmatprep.subr.mxu0 0.0
    %436 = vmatpush2.msra.mxu0 0.0
    %437 = vmatprep.subr.mxu0 0.0
    %438 = vmatpush2.msra.mxu0 0.0
    %439 = vmatprep.subr.mxu0 0.0
    %440 = vmatpush2.msra.mxu0 0.0
    %441 = vmatprep.subr.mxu0 0.0
    %442 = vmatpush2.msra.mxu0 0.0
    %443 = vmatprep.subr.mxu0 0.0
    %444 = vmatpush2.msra.mxu0 0.0
    %445 = vmatprep.subr.mxu0 0.0
    %446 = vmatpush2.msra.mxu0 0.0
    %447 = vmatprep.subr.mxu0 0.0
    %448 = vmatpush2.msra.mxu0 0.0
    %449 = vmatprep.subr.mxu0 0.0
    %450 = vmatpush2.msra.mxu0 0.0
    %451 = vmatprep.subr.mxu0 0.0
    %452 = vmatpush2.msra.mxu0 0.0
    %453 = vmatprep.subr.mxu0 0.0
    %454 = vmatpush2.msra.mxu0 0.0
    %455 = vmatprep.mubr.f32.mxu0 0.0
    %456 = vmatmul.mubr.f32.gmra.mxu0 %v344
    %v457 = vpop.f32.mrf.mxu0
    %v458 = vadd.f32 %v341, %v457
    %v459 = vpop.f32.mrf.mxu0
    %460 = vmatprep.mubr.f32.mxu0 0.0
    %461 = vmatmul.mubr.f32.gmra.mxu0 %v347
    %v462 = vpop.f32.mrf.mxu0
    %v463 = vadd.f32 %v341, %v462
    %v464 = vpop.f32.mrf.mxu0
    %465 = vmatprep.mubr.f32.mxu0 0.0
    %466 = vmatmul.mubr.f32.gmra.mxu0 %v350
    %v467 = vpop.f32.mrf.mxu0
    %v468 = vadd.f32 %v341, %v467
    %v469 = vpop.f32.mrf.mxu0
    %470 = vmatprep.mubr.f32.mxu0 0.0
    %471 = vmatmul.mubr.f32.gmra.mxu0 %v353
    %v472 = vpop.f32.mrf.mxu0
    %v473 = vadd.f32 %v341, %v472
    %v474 = vpop.f32.mrf.mxu0
    %475 = vmatprep.mubr.f32.mxu0 0.0
    %476 = vmatmul.mubr.f32.gmra.mxu0 %v356
    %v477 = vpop.f32.mrf.mxu0
    %v478 = vadd.f32 %v341, %v477
    %v479 = vpop.f32.mrf.mxu0
    %480 = vmatprep.mubr.f32.mxu0 0.0
    %481 = vmatmul.mubr.f32.gmra.mxu0 %v359
    %v482 = vpop.f32.mrf.mxu0
    %v483 = vadd.f32 %v341, %v482
    %v484 = vpop.f32.mrf.mxu0
    %485 = vmatprep.mubr.f32.mxu0 0.0
    %486 = vmatmul.mubr.f32.gmra.mxu0 %v362
    %v487 = vpop.f32.mrf.mxu0
    %v488 = vadd.f32 %v341, %v487
    %v489 = vpop.f32.mrf.mxu0
    %490 = vmatprep.mubr.f32.mxu0 0.0
    %491 = vmatmul.mubr.f32.gmra.mxu0 %v365
    %v492 = vpop.f32.mrf.mxu0
    %v493 = vadd.f32 %v341, %v492
    %v494 = vpop.f32.mrf.mxu0
    %495 = vmatprep.mubr.f32.mxu0 0.0
    %496 = vmatmul.mubr.f32.gmra.mxu0 %v368
    %v497 = vpop.f32.mrf.mxu0
    %v498 = vadd.f32 %v341, %v497
    %v499 = vpop.f32.mrf.mxu0
    %500 = vmatprep.mubr.f32.mxu0 0.0
    %501 = vmatmul.mubr.f32.gmra.mxu0 %v371
    %v502 = vpop.f32.mrf.mxu0
    %v503 = vadd.f32 %v341, %v502
    %v504 = vpop.f32.mrf.mxu0
    %505 = vmatprep.mubr.f32.mxu0 0.0
    %506 = vmatmul.mubr.f32.gmra.mxu0 %v374
    %v507 = vpop.f32.mrf.mxu0
    %v508 = vadd.f32 %v341, %v507
    %v509 = vpop.f32.mrf.mxu0
    %510 = vmatprep.mubr.f32.mxu0 0.0
    %511 = vmatmul.mubr.f32.gmra.mxu0 %v377
    %v512 = vpop.f32.mrf.mxu0
    %v513 = vadd.f32 %v341, %v512
    %v514 = vpop.f32.mrf.mxu0
    %515 = vmatprep.mubr.f32.mxu0 0.0
    %516 = vmatmul.mubr.f32.gmra.mxu0 %v380
    %v517 = vpop.f32.mrf.mxu0
    %v518 = vadd.f32 %v341, %v517
    %v519 = vpop.f32.mrf.mxu0
    %520 = vmatprep.mubr.f32.mxu0 0.0
    %521 = vmatmul.mubr.f32.gmra.mxu0 %v383
    %v522 = vpop.f32.mrf.mxu0
    %v523 = vadd.f32 %v341, %v522
    %v524 = vpop.f32.mrf.mxu0
    %525 = vmatprep.mubr.f32.mxu0 0.0
    %526 = vmatmul.mubr.f32.gmra.mxu0 %v386
    %v527 = vpop.f32.mrf.mxu0
    %v528 = vadd.f32 %v341, %v527
    %v529 = vpop.f32.mrf.mxu0
    %530 = vmatprep.mubr.f32.mxu0 0.0
    %531 = vmatmul.mubr.f32.gmra.mxu0 %v389
    %v532 = vpop.f32.mrf.mxu0
    %v533 = vadd.f32 %v341, %v532
    %v534 = vpop.f32.mrf.mxu0
    %535 = vdwg.mxu0
    %v536 = vmax.f32 %v458, 0.0
    %v537 = vmax.f32 %v463, 0.0
    %v538 = vmax.f32 %v468, 0.0
    %v539 = vmax.f32 %v473, 0.0
    %v540 = vmax.f32 %v478, 0.0
    %v541 = vmax.f32 %v483, 0.0
    %v542 = vmax.f32 %v488, 0.0
    %v543 = vmax.f32 %v493, 0.0
    %v544 = vmax.f32 %v498, 0.0
    %v545 = vmax.f32 %v503, 0.0
    %v546 = vmax.f32 %v508, 0.0
    %v547 = vmax.f32 %v513, 0.0
    %v548 = vmax.f32 %v518, 0.0
    %v549 = vmax.f32 %v523, 0.0
    %v550 = vmax.f32 %v528, 0.0
    %v551 = vmax.f32 %v533, 0.0
    %vm552 = vcmask 64512
    %v553 = vsel %vm552, %v536, -inf
    %554 = vmax.xlane.f32.xlu0 %v553
    %v555 = vpop.xlane.xlu0 %554
    %v556 = vsel %vm552, %v537, -inf
    %557 = vmax.xlane.f32.xlu0 %v556
    %v558 = vpop.xlane.xlu0 %557
    %v559 = vsel %vm552, %v538, -inf
    %560 = vmax.xlane.f32.xlu0 %v559
    %v561 = vpop.xlane.xlu0 %560
    %v562 = vsel %vm552, %v539, -inf
    %563 = vmax.xlane.f32.xlu0 %v562
    %v564 = vpop.xlane.xlu0 %563
    %v565 = vsel %vm552, %v540, -inf
    %566 = vmax.xlane.f32.xlu0 %v565
    %v567 = vpop.xlane.xlu0 %566
    %v568 = vsel %vm552, %v541, -inf
    %569 = vmax.xlane.f32.xlu0 %v568
    %v570 = vpop.xlane.xlu0 %569
    %v571 = vsel %vm552, %v542, -inf
    %572 = vmax.xlane.f32.xlu0 %v571
    %v573 = vpop.xlane.xlu0 %572
    %v574 = vsel %vm552, %v543, -inf
    %575 = vmax.xlane.f32.xlu0 %v574
    %v576 = vpop.xlane.xlu0 %575
    %v577 = vsel %vm552, %v544, -inf
    %578 = vmax.xlane.f32.xlu0 %v577
    %v579 = vpop.xlane.xlu0 %578
    %v580 = vsel %vm552, %v545, -inf
    %581 = vmax.xlane.f32.xlu0 %v580
    %v582 = vpop.xlane.xlu0 %581
    %v583 = vsel %vm552, %v546, -inf
    %584 = vmax.xlane.f32.xlu0 %v583
    %v585 = vpop.xlane.xlu0 %584
    %v586 = vsel %vm552, %v547, -inf
    %587 = vmax.xlane.f32.xlu0 %v586
    %v588 = vpop.xlane.xlu0 %587
    %v589 = vsel %vm552, %v548, -inf
    %590 = vmax.xlane.f32.xlu0 %v589
    %v591 = vpop.xlane.xlu0 %590
    %v592 = vsel %vm552, %v549, -inf
    %593 = vmax.xlane.f32.xlu0 %v592
    %v594 = vpop.xlane.xlu0 %593
    %v595 = vsel %vm552, %v550, -inf
    %596 = vmax.xlane.f32.xlu0 %v595
    %v597 = vpop.xlane.xlu0 %596
    %v598 = vsel %vm552, %v551, -inf
    %599 = vmax.xlane.f32.xlu0 %v598
    %v600 = vpop.xlane.xlu0 %599
    %v601 = vsub.f32 %v536, %v555
    %v602 = vsub.f32 %v537, %v558
    %v603 = vsub.f32 %v538, %v561
    %v604 = vsub.f32 %v539, %v564
    %v605 = vsub.f32 %v540, %v567
    %v606 = vsub.f32 %v541, %v570
    %v607 = vsub.f32 %v542, %v573
    %v608 = vsub.f32 %v543, %v576
    %v609 = vsub.f32 %v544, %v579
    %v610 = vsub.f32 %v545, %v582
    %v611 = vsub.f32 %v546, %v585
    %v612 = vsub.f32 %v547, %v588
    %v613 = vsub.f32 %v548, %v591
    %v614 = vsub.f32 %v549, %v594
    %v615 = vsub.f32 %v550, %v597
    %v616 = vsub.f32 %v551, %v600
    %v617 = vmul.f32 %v601, 1.442695
    %v618 = vpow.pop %v617
    %v619 = vmul.f32 %v602, 1.442695
    %v620 = vpow.pop %v619
    %v621 = vmul.f32 %v603, 1.442695
    %v622 = vpow.pop %v621
    %v623 = vmul.f32 %v604, 1.442695
    %v624 = vpow.pop %v623
    %v625 = vmul.f32 %v605, 1.442695
    %v626 = vpow.pop %v625
    %v627 = vmul.f32 %v606, 1.442695
    %v628 = vpow.pop %v627
    %v629 = vmul.f32 %v607, 1.442695
    %v630 = vpow.pop %v629
    %v631 = vmul.f32 %v608, 1.442695
    %v632 = vpow.pop %v631
    %v633 = vmul.f32 %v609, 1.442695
    %v634 = vpow.pop %v633
    %v635 = vmul.f32 %v610, 1.442695
    %v636 = vpow.pop %v635
    %v637 = vmul.f32 %v611, 1.442695
    %v638 = vpow.pop %v637
    %v639 = vmul.f32 %v612, 1.442695
    %v640 = vpow.pop %v639
    %v641 = vmul.f32 %v613, 1.442695
    %v642 = vpow.pop %v641
    %v643 = vmul.f32 %v614, 1.442695
    %v644 = vpow.pop %v643
    %v645 = vmul.f32 %v615, 1.442695
    %v646 = vpow.pop %v645
    %v647 = vmul.f32 %v616, 1.442695
    %v648 = vpow.pop %v647
    %v649 = vsel %vm552, %v618, 0.0
    %650 = vadd.xlane.f32.xlu0 %v649
    %v651 = vpop.xlane.xlu0 %650
    %v652 = vsel %vm552, %v620, 0.0
    %653 = vadd.xlane.f32.xlu0 %v652
    %v654 = vpop.xlane.xlu0 %653
    %v655 = vsel %vm552, %v622, 0.0
    %656 = vadd.xlane.f32.xlu0 %v655
    %v657 = vpop.xlane.xlu0 %656
    %v658 = vsel %vm552, %v624, 0.0
    %659 = vadd.xlane.f32.xlu0 %v658
    %v660 = vpop.xlane.xlu0 %659
    %v661 = vsel %vm552, %v626, 0.0
    %662 = vadd.xlane.f32.xlu0 %v661
    %v663 = vpop.xlane.xlu0 %662
    %v664 = vsel %vm552, %v628, 0.0
    %665 = vadd.xlane.f32.xlu0 %v664
    %v666 = vpop.xlane.xlu0 %665
    %v667 = vsel %vm552, %v630, 0.0
    %668 = vadd.xlane.f32.xlu0 %v667
    %v669 = vpop.xlane.xlu0 %668
    %v670 = vsel %vm552, %v632, 0.0
    %671 = vadd.xlane.f32.xlu0 %v670
    %v672 = vpop.xlane.xlu0 %671
    %v673 = vsel %vm552, %v634, 0.0
    %674 = vadd.xlane.f32.xlu0 %v673
    %v675 = vpop.xlane.xlu0 %674
    %v676 = vsel %vm552, %v636, 0.0
    %677 = vadd.xlane.f32.xlu0 %v676
    %v678 = vpop.xlane.xlu0 %677
    %v679 = vsel %vm552, %v638, 0.0
    %680 = vadd.xlane.f32.xlu0 %v679
    %v681 = vpop.xlane.xlu0 %680
    %v682 = vsel %vm552, %v640, 0.0
    %683 = vadd.xlane.f32.xlu0 %v682
    %v684 = vpop.xlane.xlu0 %683
    %v685 = vsel %vm552, %v642, 0.0
    %686 = vadd.xlane.f32.xlu0 %v685
    %v687 = vpop.xlane.xlu0 %686
    %v688 = vsel %vm552, %v644, 0.0
    %689 = vadd.xlane.f32.xlu0 %v688
    %v690 = vpop.xlane.xlu0 %689
    %v691 = vsel %vm552, %v646, 0.0
    %692 = vadd.xlane.f32.xlu0 %v691
    %v693 = vpop.xlane.xlu0 %692
    %v694 = vsel %vm552, %v648, 0.0
    %695 = vadd.xlane.f32.xlu0 %v694
    %v696 = vpop.xlane.xlu0 %695
    %v697 = vrcp.pop %v651
    %v698 = vmul.f32 %v618, %v697
    %v699 = vrcp.pop %v654
    %v700 = vmul.f32 %v620, %v699
    %v701 = vrcp.pop %v657
    %v702 = vmul.f32 %v622, %v701
    %v703 = vrcp.pop %v660
    %v704 = vmul.f32 %v624, %v703
    %v705 = vrcp.pop %v663
    %v706 = vmul.f32 %v626, %v705
    %v707 = vrcp.pop %v666
    %v708 = vmul.f32 %v628, %v707
    %v709 = vrcp.pop %v669
    %v710 = vmul.f32 %v630, %v709
    %v711 = vrcp.pop %v672
    %v712 = vmul.f32 %v632, %v711
    %v713 = vrcp.pop %v675
    %v714 = vmul.f32 %v634, %v713
    %v715 = vrcp.pop %v678
    %v716 = vmul.f32 %v636, %v715
    %v717 = vrcp.pop %v681
    %v718 = vmul.f32 %v638, %v717
    %v719 = vrcp.pop %v684
    %v720 = vmul.f32 %v640, %v719
    %v721 = vrcp.pop %v687
    %v722 = vmul.f32 %v642, %v721
    %v723 = vrcp.pop %v690
    %v724 = vmul.f32 %v644, %v723
    %v725 = vrcp.pop %v693
    %v726 = vmul.f32 %v646, %v725
    %v727 = vrcp.pop %v696
    %v728 = vmul.f32 %v648, %v727
    %729 = vst.msk [vmem:[%s4] sm:$0xff] %vm552, %v698
    %730 = vst.msk [vmem:[%s4 + $0x8] sm:$0xff] %vm552, %v700
    %731 = vst.msk [vmem:[%s4 + $0x10] sm:$0xff] %vm552, %v702
    %732 = vst.msk [vmem:[%s4 + $0x18] sm:$0xff] %vm552, %v704
    %733 = vst.msk [vmem:[%s4 + $0x20] sm:$0xff] %vm552, %v706
    %734 = vst.msk [vmem:[%s4 + $0x28] sm:$0xff] %vm552, %v708
    %735 = vst.msk [vmem:[%s4 + $0x30] sm:$0xff] %vm552, %v710
    %736 = vst.msk [vmem:[%s4 + $0x38] sm:$0xff] %vm552, %v712
    %737 = vst.msk [vmem:[%s4 + $0x40] sm:$0xff] %vm552, %v714
    %738 = vst.msk [vmem:[%s4 + $0x48] sm:$0xff] %vm552, %v716
    %739 = vst.msk [vmem:[%s4 + $0x50] sm:$0xff] %vm552, %v718
    %740 = vst.msk [vmem:[%s4 + $0x58] sm:$0xff] %vm552, %v720
    %741 = vst.msk [vmem:[%s4 + $0x60] sm:$0xff] %vm552, %v722
    %742 = vst.msk [vmem:[%s4 + $0x68] sm:$0xff] %vm552, %v724
    %743 = vst.msk [vmem:[%s4 + $0x70] sm:$0xff] %vm552, %v726
    %744 = vst.msk [vmem:[%s4 + $0x78] sm:$0xff] %vm552, %v728
  $region25: #{_fedgcn_forward_jit.3} parent=0 // pred_fallthru
    _
  // Predicated region
  $region26: #{_fedgcn_forward_jit.3} parent=0 // pred_check
    _
  $region27: #{_fedgcn_forward_jit.3} parent=0 // pred_check_branch
    %746 = sbr.rel (0) target = $region29
  $region28: #{_fedgcn_forward_jit.3} parent=0 // pred_region
    _
  $region29: #{_fedgcn_forward_jit.3} parent=0 // pred_fallthru
    _
  // Predicated region
  $region30: #{_fedgcn_forward_jit.3} parent=0 // pred_check
    _
  $region31: #{_fedgcn_forward_jit.3} parent=0 // pred_check_branch
    %748 = sbr.rel (0) target = $region33
  $region32: #{_fedgcn_forward_jit.3} parent=0 // pred_region
    _
  $region33: #{_fedgcn_forward_jit.3} parent=0 // pred_fallthru
    _

</llo_original>
